<compile_context>
chip_gen: v6e
topology: v6e:2x2x1
jax: 0.10.0
libtpu: 0.0.40
codegen_flags: <defaults>
</compile_context>

<pallas_src>
import functools
import math

import jax
import jax.numpy as jnp
from jax import lax
from jax.experimental import pallas as pl
from jax.experimental.pallas import tpu as pltpu


def make_mha_kernel(nhead: int, head_dim: int, compute_dtype):
    scale = 1.0 / math.sqrt(head_dim)
    d_model = nhead * head_dim

    def mha_kernel(x_ref, w_in_ref, b_in_ref, wo_ref, bo_ref, o_ref):
        # x_ref block: (1, S, D)
        x = x_ref[0]
        if x.dtype != compute_dtype:
            x = x.astype(compute_dtype)

        # Fused QKV projection: single MXU pass with N = 3*D.
        # W_in is pre-transposed on the host, so y = x @ W_in + b_in
        # (PyTorch Linear convention y = x @ W.T + b).
        qkv = jnp.dot(x, w_in_ref[...], preferred_element_type=jnp.float32)
        qkv = qkv + b_in_ref[...]                        # (S, 3D), f32

        q = qkv[:, :d_model] * scale                     # scale applied once
        k = qkv[:, d_model:2 * d_model]
        v = qkv[:, 2 * d_model:]

        wo_t = wo_ref[...]                               # (D, D), pre-transposed

        out = None
        for h in range(nhead):                           # static unrolled loop
            lo = h * head_dim
            qh = q[:, lo:lo + head_dim].astype(compute_dtype)
            kh = k[:, lo:lo + head_dim].astype(compute_dtype)
            vh = v[:, lo:lo + head_dim].astype(compute_dtype)

            # scores = q_h . k_h^T, contracting last dims (no explicit .T)
            s = lax.dot_general(qh, kh, (((1,), (1,)), ((), ())),
                                preferred_element_type=jnp.float32)  # (S, S)

            # softmax kept in f32
            m = jnp.max(s, axis=-1, keepdims=True)
            p = jnp.exp(s - m)
            denom = jnp.sum(p, axis=-1, keepdims=True)
            p = p * pl.reciprocal(denom, approx=True)

            oh = jnp.dot(p.astype(compute_dtype), vh,
                         preferred_element_type=jnp.float32)         # (S, hd)

            # Fold the output projection into the head loop:
            # attn[:, lo:lo+hd] @ Wo^T[lo:lo+hd, :]  -> accumulate, no concat.
            contrib = jnp.dot(oh.astype(compute_dtype),
                              wo_t[lo:lo + head_dim, :],
                              preferred_element_type=jnp.float32)    # (S, D)
            out = contrib if out is None else out + contrib

        out = out + bo_ref[...]                          # (1, D) broadcast add
        o_ref[0] = out.astype(o_ref.dtype)

    return mha_kernel


@functools.partial(jax.jit, static_argnames=("nhead", "compute_dtype"))
def self_attention(x, params, *, nhead: int, compute_dtype=jnp.float32):
    """x: (B, S, D).  params: dict matching nn.MultiheadAttention weights."""
    B, S, D = x.shape
    assert D % nhead == 0
    head_dim = D // nhead

    # ---- Host-side parameter packing (done once, outside the kernel) ----
    # Fuse q/k/v into one (D, 3D) weight, pre-transposed so the kernel never
    # transposes; also pre-transpose the output projection weight.
    w_in = jnp.concatenate([params["wq"], params["wk"], params["wv"]], axis=0).T
    b_in = jnp.concatenate([params["bq"], params["bk"], params["bv"]], axis=1)
    wo_t = params["wo"].T
    bo = params["bo"]

    w_in = w_in.astype(compute_dtype)    # bf16 weights halve DMA/VMEM bytes
    wo_t = wo_t.astype(compute_dtype)
    # Biases stay f32: they are added to f32 accumulators.

    kernel = make_mha_kernel(nhead, head_dim, compute_dtype)
    const2d = lambda b: (0, 0)

    return pl.pallas_call(
        kernel,
        out_shape=jax.ShapeDtypeStruct((B, S, D), x.dtype),
        grid_spec=pltpu.PrefetchScalarGridSpec(
            num_scalar_prefetch=0,
            grid=(B,),
            in_specs=[
                pl.BlockSpec((1, S, D), lambda b: (b, 0, 0)),   # x
                pl.BlockSpec((D, 3 * D), const2d),              # fused Wqkv^T
                pl.BlockSpec((1, 3 * D), const2d),              # fused bias
                pl.BlockSpec((D, D), const2d),                  # Wo^T
                pl.BlockSpec((1, D), const2d),                  # bo
            ],
            out_specs=pl.BlockSpec((1, S, D), lambda b: (b, 0, 0)),
        ),
        compiler_params=pltpu.CompilerParams(
            dimension_semantics=("parallel",)),
    )(x, w_in, b_in, wo_t, bo)


def init_params(key, d_model):
    """Deterministic synthetic parameters mirroring nn.MultiheadAttention:
       in_proj_weight (3D, D), in_proj_bias (3D,), out_proj (D, D) + (D,)."""
    keys = jax.random.split(key, 4)
    bound = math.sqrt(6.0 / (d_model + d_model))
    in_proj_w = jax.random.uniform(keys[0], (3 * d_model, d_model),
                                   minval=-bound, maxval=bound, dtype=jnp.float32)
    in_proj_b = jax.random.uniform(keys[1], (3 * d_model,),
                                   minval=-0.1, maxval=0.1, dtype=jnp.float32)
    out_w = jax.random.uniform(keys[2], (d_model, d_model),
                               minval=-bound, maxval=bound, dtype=jnp.float32)
    out_b = jax.random.uniform(keys[3], (d_model,),
                               minval=-0.1, maxval=0.1, dtype=jnp.float32)

    wq, wk, wv = (in_proj_w[:d_model], in_proj_w[d_model:2 * d_model],
                  in_proj_w[2 * d_model:])
    bq, bk, bv = (in_proj_b[:d_model], in_proj_b[d_model:2 * d_model],
                  in_proj_b[2 * d_model:])
    return {
        "wq": wq, "wk": wk, "wv": wv,
        "bq": bq.reshape(1, -1), "bk": bk.reshape(1, -1), "bv": bv.reshape(1, -1),
        "wo": out_w, "bo": out_b.reshape(1, -1),
    }


def reference(x, params, nhead):
    """Pure-JAX reference of nn.MultiheadAttention forward (self-attention)."""
    B, S, D = x.shape
    hd = D // nhead
    q = x @ params["wq"].T + params["bq"][0]
    k = x @ params["wk"].T + params["bk"][0]
    v = x @ params["wv"].T + params["bv"][0]

    def split_heads(t):  # (B, S, D) -> (B, H, S, hd)
        return t.reshape(B, S, nhead, hd).transpose(0, 2, 1, 3)

    qh, kh, vh = split_heads(q), split_heads(k), split_heads(v)
    s = jnp.einsum("bhqd,bhkd->bhqk", qh * (1.0 / math.sqrt(hd)), kh)
    p = jax.nn.softmax(s, axis=-1)
    o = jnp.einsum("bhqk,bhkd->bhqd", p, vh)
    o = o.transpose(0, 2, 1, 3).reshape(B, S, D)
    return o @ params["wo"].T + params["bo"][0]


if __name__ == "__main__":
    B, S, D, NHEAD = 2, 8, 32, 4

    key = jax.random.PRNGKey(0)
    kx, kp = jax.random.split(key)
    x = jax.random.normal(kx, (B, S, D), dtype=jnp.float32)
    params = init_params(kp, D)

    ref = reference(x, params, NHEAD)

    # f32 MXU operands: tight check against the pure-JAX reference
    # (tolerance allows for the EUP approximate reciprocal in the softmax).
    out_f32 = jax.block_until_ready(self_attention(x, params, nhead=NHEAD))
    assert out_f32.shape == (B, S, D)
    assert jnp.allclose(out_f32, ref, atol=5e-3, rtol=5e-3), "f32 kernel mismatch"

    # bf16 MXU operands (f32 accumulation / f32 softmax): looser tolerance.
    out_bf16 = jax.block_until_ready(
        self_attention(x, params, nhead=NHEAD, compute_dtype=jnp.bfloat16))
    assert out_bf16.shape == (B, S, D)
    assert jnp.allclose(out_bf16, ref, atol=1e-1, rtol=1e-1), "bf16 kernel mismatch"

    print("KERNEL_OK")
</pallas_src>

<mosaic_0001>
module attributes {stable_mosaic.version = 11 : i64} {
  func.func @mha_kernel(%arg0: i32, %arg1: memref<1x8x32xf32, #tpu.memory_space<vmem>>, %arg2: memref<32x96xf32, #tpu.memory_space<vmem>>, %arg3: memref<1x96xf32, #tpu.memory_space<vmem>>, %arg4: memref<32x32xf32, #tpu.memory_space<vmem>>, %arg5: memref<1x32xf32, #tpu.memory_space<vmem>>, %arg6: memref<1x8x32xf32, #tpu.memory_space<vmem>>) attributes {dimension_semantics = [#tpu.dimension_semantics<parallel>], iteration_bounds = array<i64: 2>, scalar_prefetch = 0 : i64, scratch_operands = 0 : i64, tpu.core_type = #tpu.core_type<tc>, window_params = [{transform_indices = @transform_0, window_bounds = array<i64: 1, 8, 32>}, {pipeline_mode = #tpu.pipeline_mode<synchronous>, transform_indices = @transform_1, window_bounds = array<i64: 32, 96>}, {pipeline_mode = #tpu.pipeline_mode<synchronous>, transform_indices = @transform_2, window_bounds = array<i64: 1, 96>}, {pipeline_mode = #tpu.pipeline_mode<synchronous>, transform_indices = @transform_3, window_bounds = array<i64: 32, 32>}, {pipeline_mode = #tpu.pipeline_mode<synchronous>, transform_indices = @transform_4, window_bounds = array<i64: 1, 32>}, {transform_indices = @transform_5, window_bounds = array<i64: 1, 8, 32>}]} {
    %c0 = arith.constant 0 : index
    %c0_0 = arith.constant 0 : index
    %c0_1 = arith.constant 0 : index
    %0 = vector.load %arg1[%c0, %c0_0, %c0_1] : memref<1x8x32xf32, #tpu.memory_space<vmem>>, vector<1x8x32xf32>
    %1 = vector.shape_cast %0 : vector<1x8x32xf32> to vector<8x32xf32>
    %c0_2 = arith.constant 0 : index
    %c0_3 = arith.constant 0 : index
    %2 = vector.load %arg2[%c0_2, %c0_3] : memref<32x96xf32, #tpu.memory_space<vmem>>, vector<32x96xf32>
    %cst = arith.constant dense<0.000000e+00> : vector<8x96xf32>
    %3 = tpu.matmul %1, %2, %cst {dimension_numbers = #tpu.dot_dimension_numbers<[1], [0], [0], [1], [0, 0, 1, 1], [], []>} : vector<8x32xf32>, vector<32x96xf32>, vector<8x96xf32> -> vector<8x96xf32>
    %c0_4 = arith.constant 0 : index
    %c0_5 = arith.constant 0 : index
    %4 = vector.load %arg3[%c0_4, %c0_5] : memref<1x96xf32, #tpu.memory_space<vmem>>, vector<1x96xf32>
    %5 = vector.broadcast %4 : vector<1x96xf32> to vector<8x96xf32>
    %6 = arith.addf %3, %5 : vector<8x96xf32>
    %7 = vector.extract_strided_slice %6 {offsets = [0, 0], sizes = [8, 32], strides = [1, 1]} : vector<8x96xf32> to vector<8x32xf32>
    %cst_6 = arith.constant 0.353553385 : f32
    %8 = vector.broadcast %cst_6 : f32 to vector<8x32xf32>
    %9 = arith.mulf %7, %8 : vector<8x32xf32>
    %10 = vector.extract_strided_slice %6 {offsets = [0, 32], sizes = [8, 32], strides = [1, 1]} : vector<8x96xf32> to vector<8x32xf32>
    %11 = vector.extract_strided_slice %6 {offsets = [0, 64], sizes = [8, 32], strides = [1, 1]} : vector<8x96xf32> to vector<8x32xf32>
    %c0_7 = arith.constant 0 : index
    %c0_8 = arith.constant 0 : index
    %12 = vector.load %arg4[%c0_7, %c0_8] : memref<32x32xf32, #tpu.memory_space<vmem>>, vector<32x32xf32>
    %13 = vector.extract_strided_slice %9 {offsets = [0, 0], sizes = [8, 8], strides = [1, 1]} : vector<8x32xf32> to vector<8x8xf32>
    %14 = vector.extract_strided_slice %10 {offsets = [0, 0], sizes = [8, 8], strides = [1, 1]} : vector<8x32xf32> to vector<8x8xf32>
    %15 = vector.extract_strided_slice %11 {offsets = [0, 0], sizes = [8, 8], strides = [1, 1]} : vector<8x32xf32> to vector<8x8xf32>
    %cst_9 = arith.constant dense<0.000000e+00> : vector<8x8xf32>
    %16 = tpu.matmul %13, %14, %cst_9 {dimension_numbers = #tpu.dot_dimension_numbers<[1], [1], [0], [0], [0, 0, 1, 0], [], []>} : vector<8x8xf32>, vector<8x8xf32>, vector<8x8xf32> -> vector<8x8xf32>
    %cst_10 = arith.constant dense<0xFF800000> : vector<8xf32>
    %17 = vector.multi_reduction <maximumf>, %16, %cst_10 [1] : vector<8x8xf32> to vector<8xf32>
    %18 = vector.shape_cast %17 : vector<8xf32> to vector<8x1xf32>
    %19 = vector.broadcast %18 : vector<8x1xf32> to vector<8x8xf32>
    %20 = arith.subf %16, %19 : vector<8x8xf32>
    %21 = math.exp %20 : vector<8x8xf32>
    %cst_11 = arith.constant dense<0.000000e+00> : vector<8xf32>
    %22 = vector.multi_reduction <add>, %21, %cst_11 [1] : vector<8x8xf32> to vector<8xf32>
    %23 = vector.shape_cast %22 : vector<8xf32> to vector<8x1xf32>
    %24 = tpu.reciprocal %23 {approx = true} : vector<8x1xf32> -> vector<8x1xf32>
    %25 = vector.broadcast %24 : vector<8x1xf32> to vector<8x8xf32>
    %26 = arith.mulf %21, %25 : vector<8x8xf32>
    %cst_12 = arith.constant dense<0.000000e+00> : vector<8x8xf32>
    %27 = tpu.matmul %26, %15, %cst_12 {dimension_numbers = #tpu.dot_dimension_numbers<[1], [0], [0], [1], [0, 0, 1, 1], [], []>} : vector<8x8xf32>, vector<8x8xf32>, vector<8x8xf32> -> vector<8x8xf32>
    %28 = vector.extract_strided_slice %12 {offsets = [0, 0], sizes = [8, 32], strides = [1, 1]} : vector<32x32xf32> to vector<8x32xf32>
    %cst_13 = arith.constant dense<0.000000e+00> : vector<8x32xf32>
    %29 = tpu.matmul %27, %28, %cst_13 {dimension_numbers = #tpu.dot_dimension_numbers<[1], [0], [0], [1], [0, 0, 1, 1], [], []>} : vector<8x8xf32>, vector<8x32xf32>, vector<8x32xf32> -> vector<8x32xf32>
    %30 = vector.extract_strided_slice %9 {offsets = [0, 8], sizes = [8, 8], strides = [1, 1]} : vector<8x32xf32> to vector<8x8xf32>
    %31 = vector.extract_strided_slice %10 {offsets = [0, 8], sizes = [8, 8], strides = [1, 1]} : vector<8x32xf32> to vector<8x8xf32>
    %32 = vector.extract_strided_slice %11 {offsets = [0, 8], sizes = [8, 8], strides = [1, 1]} : vector<8x32xf32> to vector<8x8xf32>
    %cst_14 = arith.constant dense<0.000000e+00> : vector<8x8xf32>
    %33 = tpu.matmul %30, %31, %cst_14 {dimension_numbers = #tpu.dot_dimension_numbers<[1], [1], [0], [0], [0, 0, 1, 0], [], []>} : vector<8x8xf32>, vector<8x8xf32>, vector<8x8xf32> -> vector<8x8xf32>
    %cst_15 = arith.constant dense<0xFF800000> : vector<8xf32>
    %34 = vector.multi_reduction <maximumf>, %33, %cst_15 [1] : vector<8x8xf32> to vector<8xf32>
    %35 = vector.shape_cast %34 : vector<8xf32> to vector<8x1xf32>
    %36 = vector.broadcast %35 : vector<8x1xf32> to vector<8x8xf32>
    %37 = arith.subf %33, %36 : vector<8x8xf32>
    %38 = math.exp %37 : vector<8x8xf32>
    %cst_16 = arith.constant dense<0.000000e+00> : vector<8xf32>
    %39 = vector.multi_reduction <add>, %38, %cst_16 [1] : vector<8x8xf32> to vector<8xf32>
    %40 = vector.shape_cast %39 : vector<8xf32> to vector<8x1xf32>
    %41 = tpu.reciprocal %40 {approx = true} : vector<8x1xf32> -> vector<8x1xf32>
    %42 = vector.broadcast %41 : vector<8x1xf32> to vector<8x8xf32>
    %43 = arith.mulf %38, %42 : vector<8x8xf32>
    %cst_17 = arith.constant dense<0.000000e+00> : vector<8x8xf32>
    %44 = tpu.matmul %43, %32, %cst_17 {dimension_numbers = #tpu.dot_dimension_numbers<[1], [0], [0], [1], [0, 0, 1, 1], [], []>} : vector<8x8xf32>, vector<8x8xf32>, vector<8x8xf32> -> vector<8x8xf32>
    %45 = vector.extract_strided_slice %12 {offsets = [8, 0], sizes = [8, 32], strides = [1, 1]} : vector<32x32xf32> to vector<8x32xf32>
    %cst_18 = arith.constant dense<0.000000e+00> : vector<8x32xf32>
    %46 = tpu.matmul %44, %45, %cst_18 {dimension_numbers = #tpu.dot_dimension_numbers<[1], [0], [0], [1], [0, 0, 1, 1], [], []>} : vector<8x8xf32>, vector<8x32xf32>, vector<8x32xf32> -> vector<8x32xf32>
    %47 = arith.addf %29, %46 : vector<8x32xf32>
    %48 = vector.extract_strided_slice %9 {offsets = [0, 16], sizes = [8, 8], strides = [1, 1]} : vector<8x32xf32> to vector<8x8xf32>
    %49 = vector.extract_strided_slice %10 {offsets = [0, 16], sizes = [8, 8], strides = [1, 1]} : vector<8x32xf32> to vector<8x8xf32>
    %50 = vector.extract_strided_slice %11 {offsets = [0, 16], sizes = [8, 8], strides = [1, 1]} : vector<8x32xf32> to vector<8x8xf32>
    %cst_19 = arith.constant dense<0.000000e+00> : vector<8x8xf32>
    %51 = tpu.matmul %48, %49, %cst_19 {dimension_numbers = #tpu.dot_dimension_numbers<[1], [1], [0], [0], [0, 0, 1, 0], [], []>} : vector<8x8xf32>, vector<8x8xf32>, vector<8x8xf32> -> vector<8x8xf32>
    %cst_20 = arith.constant dense<0xFF800000> : vector<8xf32>
    %52 = vector.multi_reduction <maximumf>, %51, %cst_20 [1] : vector<8x8xf32> to vector<8xf32>
    %53 = vector.shape_cast %52 : vector<8xf32> to vector<8x1xf32>
    %54 = vector.broadcast %53 : vector<8x1xf32> to vector<8x8xf32>
    %55 = arith.subf %51, %54 : vector<8x8xf32>
    %56 = math.exp %55 : vector<8x8xf32>
    %cst_21 = arith.constant dense<0.000000e+00> : vector<8xf32>
    %57 = vector.multi_reduction <add>, %56, %cst_21 [1] : vector<8x8xf32> to vector<8xf32>
    %58 = vector.shape_cast %57 : vector<8xf32> to vector<8x1xf32>
    %59 = tpu.reciprocal %58 {approx = true} : vector<8x1xf32> -> vector<8x1xf32>
    %60 = vector.broadcast %59 : vector<8x1xf32> to vector<8x8xf32>
    %61 = arith.mulf %56, %60 : vector<8x8xf32>
    %cst_22 = arith.constant dense<0.000000e+00> : vector<8x8xf32>
    %62 = tpu.matmul %61, %50, %cst_22 {dimension_numbers = #tpu.dot_dimension_numbers<[1], [0], [0], [1], [0, 0, 1, 1], [], []>} : vector<8x8xf32>, vector<8x8xf32>, vector<8x8xf32> -> vector<8x8xf32>
    %63 = vector.extract_strided_slice %12 {offsets = [16, 0], sizes = [8, 32], strides = [1, 1]} : vector<32x32xf32> to vector<8x32xf32>
    %cst_23 = arith.constant dense<0.000000e+00> : vector<8x32xf32>
    %64 = tpu.matmul %62, %63, %cst_23 {dimension_numbers = #tpu.dot_dimension_numbers<[1], [0], [0], [1], [0, 0, 1, 1], [], []>} : vector<8x8xf32>, vector<8x32xf32>, vector<8x32xf32> -> vector<8x32xf32>
    %65 = arith.addf %47, %64 : vector<8x32xf32>
    %66 = vector.extract_strided_slice %9 {offsets = [0, 24], sizes = [8, 8], strides = [1, 1]} : vector<8x32xf32> to vector<8x8xf32>
    %67 = vector.extract_strided_slice %10 {offsets = [0, 24], sizes = [8, 8], strides = [1, 1]} : vector<8x32xf32> to vector<8x8xf32>
    %68 = vector.extract_strided_slice %11 {offsets = [0, 24], sizes = [8, 8], strides = [1, 1]} : vector<8x32xf32> to vector<8x8xf32>
    %cst_24 = arith.constant dense<0.000000e+00> : vector<8x8xf32>
    %69 = tpu.matmul %66, %67, %cst_24 {dimension_numbers = #tpu.dot_dimension_numbers<[1], [1], [0], [0], [0, 0, 1, 0], [], []>} : vector<8x8xf32>, vector<8x8xf32>, vector<8x8xf32> -> vector<8x8xf32>
    %cst_25 = arith.constant dense<0xFF800000> : vector<8xf32>
    %70 = vector.multi_reduction <maximumf>, %69, %cst_25 [1] : vector<8x8xf32> to vector<8xf32>
    %71 = vector.shape_cast %70 : vector<8xf32> to vector<8x1xf32>
    %72 = vector.broadcast %71 : vector<8x1xf32> to vector<8x8xf32>
    %73 = arith.subf %69, %72 : vector<8x8xf32>
    %74 = math.exp %73 : vector<8x8xf32>
    %cst_26 = arith.constant dense<0.000000e+00> : vector<8xf32>
    %75 = vector.multi_reduction <add>, %74, %cst_26 [1] : vector<8x8xf32> to vector<8xf32>
    %76 = vector.shape_cast %75 : vector<8xf32> to vector<8x1xf32>
    %77 = tpu.reciprocal %76 {approx = true} : vector<8x1xf32> -> vector<8x1xf32>
    %78 = vector.broadcast %77 : vector<8x1xf32> to vector<8x8xf32>
    %79 = arith.mulf %74, %78 : vector<8x8xf32>
    %cst_27 = arith.constant dense<0.000000e+00> : vector<8x8xf32>
    %80 = tpu.matmul %79, %68, %cst_27 {dimension_numbers = #tpu.dot_dimension_numbers<[1], [0], [0], [1], [0, 0, 1, 1], [], []>} : vector<8x8xf32>, vector<8x8xf32>, vector<8x8xf32> -> vector<8x8xf32>
    %81 = vector.extract_strided_slice %12 {offsets = [24, 0], sizes = [8, 32], strides = [1, 1]} : vector<32x32xf32> to vector<8x32xf32>
    %cst_28 = arith.constant dense<0.000000e+00> : vector<8x32xf32>
    %82 = tpu.matmul %80, %81, %cst_28 {dimension_numbers = #tpu.dot_dimension_numbers<[1], [0], [0], [1], [0, 0, 1, 1], [], []>} : vector<8x8xf32>, vector<8x32xf32>, vector<8x32xf32> -> vector<8x32xf32>
    %83 = arith.addf %65, %82 : vector<8x32xf32>
    %c0_29 = arith.constant 0 : index
    %c0_30 = arith.constant 0 : index
    %84 = vector.load %arg5[%c0_29, %c0_30] : memref<1x32xf32, #tpu.memory_space<vmem>>, vector<1x32xf32>
    %85 = vector.broadcast %84 : vector<1x32xf32> to vector<8x32xf32>
    %86 = arith.addf %83, %85 : vector<8x32xf32>
    %c0_31 = arith.constant 0 : index
    %c0_32 = arith.constant 0 : index
    %c0_33 = arith.constant 0 : index
    %87 = vector.load %arg6[%c0_31, %c0_32, %c0_33] : memref<1x8x32xf32, #tpu.memory_space<vmem>>, vector<1x8x32xf32>
    %88 = vector.shape_cast %87 : vector<1x8x32xf32> to vector<8x32xf32>
    %89 = vector.shape_cast %86 : vector<8x32xf32> to vector<1x8x32xf32>
    tpu.vector_store %arg6[%c0_31, %c0_32, %c0_33], %89 {strides = array<i32>} : memref<1x8x32xf32, #tpu.memory_space<vmem>>, vector<1x8x32xf32>,
    return
  }
  func.func @transform_0(%arg0: i32) -> (i32, i32, i32) {
    %c0_i32 = arith.constant 0 : i32
    %c0_i32_0 = arith.constant 0 : i32
    %c0_i32_1 = arith.constant 0 : i32
    return %arg0, %c0_i32, %c0_i32_0 : i32, i32, i32
  }
  func.func @transform_1(%arg0: i32) -> (i32, i32) {
    %c0_i32 = arith.constant 0 : i32
    %c0_i32_0 = arith.constant 0 : i32
    %c0_i32_1 = arith.constant 0 : i32
    return %c0_i32, %c0_i32_0 : i32, i32
  }
  func.func @transform_2(%arg0: i32) -> (i32, i32) {
    %c0_i32 = arith.constant 0 : i32
    %c0_i32_0 = arith.constant 0 : i32
    %c0_i32_1 = arith.constant 0 : i32
    return %c0_i32, %c0_i32_0 : i32, i32
  }
  func.func @transform_3(%arg0: i32) -> (i32, i32) {
    %c0_i32 = arith.constant 0 : i32
    %c0_i32_0 = arith.constant 0 : i32
    %c0_i32_1 = arith.constant 0 : i32
    return %c0_i32, %c0_i32_0 : i32, i32
  }
  func.func @transform_4(%arg0: i32) -> (i32, i32) {
    %c0_i32 = arith.constant 0 : i32
    %c0_i32_0 = arith.constant 0 : i32
    %c0_i32_1 = arith.constant 0 : i32
    return %c0_i32, %c0_i32_0 : i32, i32
  }
  func.func @transform_5(%arg0: i32) -> (i32, i32, i32) {
    %c0_i32 = arith.constant 0 : i32
    %c0_i32_0 = arith.constant 0 : i32
    %c0_i32_1 = arith.constant 0 : i32
    return %arg0, %c0_i32, %c0_i32_0 : i32, i32, i32
  }
}

</mosaic_0001>

<llo_original>
// kernel: self_attention.1
$region0: #{self_attention.1}
  #allocation0 [shape = 'u32[]', space=smem, size = 0x4, offset = 0x4, fixed_abs, tag = 'smem constant byte address 0x4 - core index']
  #allocation1 [shape = 'u32[144,128]{1,0:T(1,128)}', space=vmem, size = 0x12000, scoped, tag = 'internal scratch']
  %s0 = inlined_call_operand.vmem [shape: f32[2,8,32], index: 0, kind: input, shape index: {}]
  %s1 = inlined_call_operand.vmem [shape: f32[32,96], index: 1, kind: input, shape index: {}]
  %s2 = inlined_call_operand.vmem [shape: f32[1,96], index: 2, kind: input, shape index: {}]
  %s3 = inlined_call_operand.vmem [shape: f32[32,32], index: 3, kind: input, shape index: {}]
  %s4 = inlined_call_operand.vmem [shape: f32[1,32], index: 4, kind: input, shape index: {}]
  %s5 = inlined_call_operand.hbm [shape: f32[2,8,32], index: 5, kind: output, shape index: {}]
  %s6 = sld [smem:[#allocation0]]
  $region53: #{self_attention.1} parent=0
    _
  %s8 = ssub.s32 1, %s6
  %s9 = scalar_select 0, %s8, %s6
  $region1: #{self_attention.1} parent=0
    #allocation2 [shape = 'u8[8192]{0}', space=vmem, size = 0x2000, scoped, tag = 'output window, operand 0']
    #allocation3 [shape = 's32[2]{0}', space=sflag, size = 0x8, scoped, tag = 'scoped memory for self_attention.1']
    %10 = vsyncpa [#allocation3], 0
    %s11 = scalar_lea.sflag [#allocation3], 1
    %12 = vsyncpa %s11, 0
    loop: start=0, step=1, limit=4
    $region2: #{self_attention.1} parent=1 // loop_pre_header
      _
    $region3: #{self_attention.1} parent=1 // loop_header
      %s14 = sphi 0, %s18
      %p15 = scmp.ge.s32.totalorder %s14, 4
      %s24 = sphi 0, %s26
      %s27 = sphi 0, %s24
      %s28 = sphi 0, %s27
      %s44 = sphi 0, %s28
      %s48 = sphi 0, %s48
      %s50 = sphi 0, %s48
      %s51 = sphi 0, %s50
      %s65 = sphi 0, %s51
      %s69 = sphi 0, %s69
      %s71 = sphi 0, %s69
      %s72 = sphi 0, %s71
      %s86 = sphi 0, %s72
      %s90 = sphi 0, %s90
      %s92 = sphi 0, %s90
      %s93 = sphi 0, %s92
      %s107 = sphi 0, %s93
      %s111 = sphi 0, %s111
      %s113 = sphi 0, %s111
      %s114 = sphi 0, %s113
      %s128 = sphi 0, %s114
      %s134 = sphi 0, %s136
      %s137 = sphi 0, %s134
      %s138 = sphi 0, %s137
      %s154 = sphi 0, %s138
    $region4: #{self_attention.1} parent=1 // loop_header_branch
      %17 = sbr.rel (%p15) target = $region8
    $region5: #{self_attention.1} parent=1 // loop_body
      %s19 = ssub.s32 %s14, 1
      %s20 = ssub.s32 %s14, 2
      %s21 = sadd.s32 %s14, 1
      %s22 = ssub.s32 %s14, %s21
      %p23 = scmp.eq.s32.totalorder %s22, 0
      %s25 = sadd.s32 %s24, 1
      %s26 = scalar_select %p23, %s24, %s25
      %p29 = pneg %p23
      %p30 = scmp.eq.s32.totalorder %s14, 1
      %p31 = por %p29, %p30
      %p32 = scmp.ne.s32.totalorder %s24, %s27
      %p33 = scmp.eq.s32.totalorder %s14, 0
      %p34 = por %p32, %p33
      %p35 = scmp.ne.s32.totalorder %s24, %s27
      %p36 = scmp.eq.s32.totalorder %s19, 1
      %p37 = por %p35, %p36
      %p38 = scmp.ne.s32.totalorder %s27, %s28
      %p39 = scmp.eq.s32.totalorder %s19, 0
      %p40 = por %p38, %p39
      %p41 = scmp.ne.s32.totalorder %s27, %s28
      %p42 = scmp.eq.s32.totalorder %s20, 1
      %p43 = por %p41, %p42
      %p45 = scmp.ne.s32.totalorder %s28, %s44
      %p46 = scmp.eq.s32.totalorder %s20, 0
      %p47 = por %p45, %p46
      %s49 = sadd.s32 %s48, 1
      %p52 = scmp.eq.s32.totalorder %s14, 1
      %p53 = scmp.ne.s32.totalorder %s48, %s50
      %p54 = scmp.eq.s32.totalorder %s14, 0
      %p55 = por %p53, %p54
      %p56 = scmp.ne.s32.totalorder %s48, %s50
      %p57 = scmp.eq.s32.totalorder %s19, 1
      %p58 = por %p56, %p57
      %p59 = scmp.ne.s32.totalorder %s50, %s51
      %p60 = scmp.eq.s32.totalorder %s19, 0
      %p61 = por %p59, %p60
      %p62 = scmp.ne.s32.totalorder %s50, %s51
      %p63 = scmp.eq.s32.totalorder %s20, 1
      %p64 = por %p62, %p63
      %p66 = scmp.ne.s32.totalorder %s51, %s65
      %p67 = scmp.eq.s32.totalorder %s20, 0
      %p68 = por %p66, %p67
      %s70 = sadd.s32 %s69, 1
      %p73 = scmp.eq.s32.totalorder %s14, 1
      %p74 = scmp.ne.s32.totalorder %s69, %s71
      %p75 = scmp.eq.s32.totalorder %s14, 0
      %p76 = por %p74, %p75
      %p77 = scmp.ne.s32.totalorder %s69, %s71
      %p78 = scmp.eq.s32.totalorder %s19, 1
      %p79 = por %p77, %p78
      %p80 = scmp.ne.s32.totalorder %s71, %s72
      %p81 = scmp.eq.s32.totalorder %s19, 0
      %p82 = por %p80, %p81
      %p83 = scmp.ne.s32.totalorder %s71, %s72
      %p84 = scmp.eq.s32.totalorder %s20, 1
      %p85 = por %p83, %p84
      %p87 = scmp.ne.s32.totalorder %s72, %s86
      %p88 = scmp.eq.s32.totalorder %s20, 0
      %p89 = por %p87, %p88
      %s91 = sadd.s32 %s90, 1
      %p94 = scmp.eq.s32.totalorder %s14, 1
      %p95 = scmp.ne.s32.totalorder %s90, %s92
      %p96 = scmp.eq.s32.totalorder %s14, 0
      %p97 = por %p95, %p96
      %p98 = scmp.ne.s32.totalorder %s90, %s92
      %p99 = scmp.eq.s32.totalorder %s19, 1
      %p100 = por %p98, %p99
      %p101 = scmp.ne.s32.totalorder %s92, %s93
      %p102 = scmp.eq.s32.totalorder %s19, 0
      %p103 = por %p101, %p102
      %p104 = scmp.ne.s32.totalorder %s92, %s93
      %p105 = scmp.eq.s32.totalorder %s20, 1
      %p106 = por %p104, %p105
      %p108 = scmp.ne.s32.totalorder %s93, %s107
      %p109 = scmp.eq.s32.totalorder %s20, 0
      %p110 = por %p108, %p109
      %s112 = sadd.s32 %s111, 1
      %p115 = scmp.eq.s32.totalorder %s14, 1
      %p116 = scmp.ne.s32.totalorder %s111, %s113
      %p117 = scmp.eq.s32.totalorder %s14, 0
      %p118 = por %p116, %p117
      %p119 = scmp.ne.s32.totalorder %s111, %s113
      %p120 = scmp.eq.s32.totalorder %s19, 1
      %p121 = por %p119, %p120
      %p122 = scmp.ne.s32.totalorder %s113, %s114
      %p123 = scmp.eq.s32.totalorder %s19, 0
      %p124 = por %p122, %p123
      %p125 = scmp.ne.s32.totalorder %s113, %s114
      %p126 = scmp.eq.s32.totalorder %s20, 1
      %p127 = por %p125, %p126
      %p129 = scmp.ne.s32.totalorder %s114, %s128
      %p130 = scmp.eq.s32.totalorder %s20, 0
      %p131 = por %p129, %p130
      %s132 = ssub.s32 %s14, %s21
      %p133 = scmp.eq.s32.totalorder %s132, 0
      %s135 = sadd.s32 %s134, 1
      %s136 = scalar_select %p133, %s134, %s135
      %p139 = pneg %p133
      %p140 = scmp.eq.s32.totalorder %s14, 1
      %p141 = por %p139, %p140
      %p142 = scmp.ne.s32.totalorder %s134, %s137
      %p143 = scmp.eq.s32.totalorder %s14, 0
      %p144 = por %p142, %p143
      %p145 = scmp.ne.s32.totalorder %s134, %s137
      %p146 = scmp.eq.s32.totalorder %s19, 1
      %p147 = por %p145, %p146
      %p148 = scmp.ne.s32.totalorder %s137, %s138
      %p149 = scmp.eq.s32.totalorder %s19, 0
      %p150 = por %p148, %p149
      %p151 = scmp.ne.s32.totalorder %s137, %s138
      %p152 = scmp.eq.s32.totalorder %s20, 1
      %p153 = por %p151, %p152
      %p155 = scmp.ne.s32.totalorder %s138, %s154
      %p156 = scmp.eq.s32.totalorder %s20, 0
      %p157 = por %p155, %p156
      %p158 = scmp.le.s32.totalorder 1, %s14
      %p159 = scmp.lt.s32.totalorder %s14, 3
      %p160 = pnand %p158, %p159
      %p161 = pneg %p160
      // Predicated region
      $region9: #{self_attention.1} parent=5 // pred_check
        _
      $region10: #{self_attention.1} parent=5 // pred_check_branch
        %163 = sbr.rel (%p160) target = $region12
      $region11: #{self_attention.1} parent=5 // pred_region
        %s164 = ssub.s32 %s14, 1
        // Predicated region
        $region13: #{self_attention.1} parent=11 // pred_check
          %p165 = pneg %p61
        $region14: #{self_attention.1} parent=11 // pred_check_branch
          %167 = sbr.rel (%p165) target = $region16
        $region15: #{self_attention.1} parent=11 // pred_region
          _
        $region16: #{self_attention.1} parent=11 // pred_fallthru
          _
        // Predicated region
        $region17: #{self_attention.1} parent=11 // pred_check
          %p168 = pneg %p82
        $region18: #{self_attention.1} parent=11 // pred_check_branch
          %170 = sbr.rel (%p168) target = $region20
        $region19: #{self_attention.1} parent=11 // pred_region
          _
        $region20: #{self_attention.1} parent=11 // pred_fallthru
          _
        // Predicated region
        $region21: #{self_attention.1} parent=11 // pred_check
          %p171 = pneg %p103
        $region22: #{self_attention.1} parent=11 // pred_check_branch
          %173 = sbr.rel (%p171) target = $region24
        $region23: #{self_attention.1} parent=11 // pred_region
          _
        $region24: #{self_attention.1} parent=11 // pred_fallthru
          _
        // Predicated region
        $region25: #{self_attention.1} parent=11 // pred_check
          %p174 = pneg %p124
        $region26: #{self_attention.1} parent=11 // pred_check_branch
          %176 = sbr.rel (%p174) target = $region28
        $region27: #{self_attention.1} parent=11 // pred_region
          _
        $region28: #{self_attention.1} parent=11 // pred_fallthru
          _
      $region12: #{self_attention.1} parent=5 // pred_fallthru
        _
      %p177 = scmp.lt.s32.totalorder %s14, 2
      // Predicated region
      $region29: #{self_attention.1} parent=5 // pred_check
        %p178 = pneg %p177
      $region30: #{self_attention.1} parent=5 // pred_check_branch
        %180 = sbr.rel (%p178) target = $region32
      $region31: #{self_attention.1} parent=5 // pred_region
        // Predicated region
        $region33: #{self_attention.1} parent=31 // pred_check
          %p181 = pneg %p34
        $region34: #{self_attention.1} parent=31 // pred_check_branch
          %183 = sbr.rel (%p181) target = $region36
        $region35: #{self_attention.1} parent=31 // pred_region
          %p184 = scmp.lt.s32.totalorder %s14, 1
          %s185 = scalar_select %p184, %s14, 1
          %s186 = smul.addr %s185, 8
          %s187 = scalar_lea.vmem %s0, %s186
        $region36: #{self_attention.1} parent=31 // pred_fallthru
          _
      $region32: #{self_attention.1} parent=5 // pred_fallthru
        _
      %p188 = scmp.le.s32.totalorder 1, %s14
      %p189 = scmp.lt.s32.totalorder %s14, 3
      %p190 = pnand %p188, %p189
      %p191 = pneg %p190
      // Predicated region
      $region37: #{self_attention.1} parent=5 // pred_check
        _
      $region38: #{self_attention.1} parent=5 // pred_check_branch
        %193 = sbr.rel (%p190) target = $region40
      $region39: #{self_attention.1} parent=5 // pred_region
        %s194 = ssub.s32 %s14, 1
        %p195 = scmp.lt.s32.totalorder %s19, 1
        %s196 = scalar_select %p195, %s19, 1
        %s197 = smul.addr %s196, 8
        %s198 = scalar_lea.vmem %s0, %s197
        %p199 = pneg %p40
        %p200 = pneg %p37
        %p201 = pneg %p61
        %p202 = pneg %p58
        %p203 = pneg %p82
        %p204 = pneg %p79
        %p205 = pneg %p103
        %p206 = pneg %p100
        %p207 = pneg %p124
        %p208 = pneg %p121
        %p209 = pneg %p150
        %p210 = pneg %p147
        %s211 = sand.u32 %s137, 1
        %s212 = scalar_lea.sflag [#allocation3], %s211
        %s213 = sand.u32 %s137, 1
        %s214 = smul.addr %s213, 8
        %s215 = scalar_lea.vmem [#allocation2], %s214
        %p216 = scmp.lt.s32.totalorder %s19, 1
        %s217 = scalar_select %p216, %s19, 1
        %s218 = smul.addr %s217, 8
        %s219 = scalar_lea.vmem %s0, %s218
        %v220 = vld [vmem:[%s219] sm:$0xff]
        %v221 = vld [vmem:[%s1] sm:$0xff]
        %v222 = vld [vmem:[%s1 + $0x8] sm:$0xff]
        %v223 = vld [vmem:[%s1 + $0x10] sm:$0xff]
        %v224 = vld [vmem:[%s1 + $0x18] sm:$0xff]
        %v225 = vld [vmem:[%s2] sm:$0x1]
        %v227 = vlaneseq
        %v228 = vshrl.u32 %v227, 7
        %v229 = vsub.s32 0, %v228
        %v230 = vrot.slane %v225, %v229
        %vm232 = vcmask 261120
        %v234 = vsel %vm232, %v220, 0
        %236 = vmatprep.subr.mxu0 0.0
        %237 = vmatpush1.msra.mxu0 0.0
        %238 = vmatprep.subr.mxu0 0.0
        %239 = vmatpush1.msra.mxu0 0.0
        %240 = vmatprep.subr.mxu0 0.0
        %241 = vmatpush1.msra.mxu0 0.0
        %242 = vmatprep.subr.mxu0 0.0
        %243 = vmatpush1.msra.mxu0 0.0
        %244 = vmatprep.subr.mxu0 0.0
        %245 = vmatpush1.msra.mxu0 0.0
        %246 = vmatprep.subr.mxu0 0.0
        %247 = vmatpush1.msra.mxu0 0.0
        %248 = vmatprep.subr.mxu0 0.0
        %249 = vmatpush1.msra.mxu0 0.0
        %250 = vmatprep.subr.mxu0 0.0
        %251 = vmatpush1.msra.mxu0 0.0
        %252 = vmatprep.subr.mxu0 0.0
        %253 = vmatpush1.msra.mxu0 0.0
        %254 = vmatprep.subr.mxu0 0.0
        %255 = vmatpush1.msra.mxu0 0.0
        %256 = vmatprep.subr.mxu0 0.0
        %257 = vmatpush1.msra.mxu0 0.0
        %258 = vmatprep.subr.mxu0 0.0
        %259 = vmatpush1.msra.mxu0 0.0
        %260 = vmatprep.subr.mxu0 0.0
        %261 = vmatpush1.msra.mxu0 %v224
        %262 = vmatprep.subr.mxu0 0.0
        %263 = vmatpush1.msra.mxu0 %v223
        %264 = vmatprep.subr.mxu0 0.0
        %265 = vmatpush1.msra.mxu0 %v222
        %266 = vmatprep.subr.mxu0 0.0
        %267 = vmatpush1.msra.mxu0 %v221
        %268 = vmatprep.subr.mxu0 0.0
        %269 = vmatpush2.msra.mxu0 0.0
        %270 = vmatprep.subr.mxu0 0.0
        %271 = vmatpush2.msra.mxu0 0.0
        %272 = vmatprep.subr.mxu0 0.0
        %273 = vmatpush2.msra.mxu0 0.0
        %274 = vmatprep.subr.mxu0 0.0
        %275 = vmatpush2.msra.mxu0 0.0
        %276 = vmatprep.subr.mxu0 0.0
        %277 = vmatpush2.msra.mxu0 0.0
        %278 = vmatprep.subr.mxu0 0.0
        %279 = vmatpush2.msra.mxu0 0.0
        %280 = vmatprep.subr.mxu0 0.0
        %281 = vmatpush2.msra.mxu0 0.0
        %282 = vmatprep.subr.mxu0 0.0
        %283 = vmatpush2.msra.mxu0 0.0
        %284 = vmatprep.subr.mxu0 0.0
        %285 = vmatpush2.msra.mxu0 0.0
        %286 = vmatprep.subr.mxu0 0.0
        %287 = vmatpush2.msra.mxu0 0.0
        %288 = vmatprep.subr.mxu0 0.0
        %289 = vmatpush2.msra.mxu0 0.0
        %290 = vmatprep.subr.mxu0 0.0
        %291 = vmatpush2.msra.mxu0 0.0
        %292 = vmatprep.subr.mxu0 0.0
        %293 = vmatpush2.msra.mxu0 0.0
        %294 = vmatprep.subr.mxu0 0.0
        %295 = vmatpush2.msra.mxu0 0.0
        %296 = vmatprep.subr.mxu0 0.0
        %297 = vmatpush2.msra.mxu0 0.0
        %298 = vmatprep.subr.mxu0 0.0
        %299 = vmatpush2.msra.mxu0 0.0
        %300 = vmatprep.mubr.f32.mxu0 0.0
        %301 = vmatmul.mubr.f32.gmra.mxu0 %v234
        %v302 = vpop.f32.mrf.mxu0
        %v303 = vadd.f32 %v230, %v302
        %v304 = vpop.f32.mrf.mxu0
        %305 = vdwg.mxu0
        %v306 = vmul.f32 %v303, 0.35355338
        %v307 = vld [vmem:[%s3] sm:$0xff]
        %v308 = vld [vmem:[%s3 + $0x8] sm:$0xff]
        %v309 = vld [vmem:[%s3 + $0x10] sm:$0xff]
        %v310 = vld [vmem:[%s3 + $0x18] sm:$0xff]
        %312 = vrot.lane.b32.xlu0 %v303, 96
        %v313 = vpop.permute.xlu0 %312
        %vm314 = vcmask 64512
        %v316 = vsel %vm314, %v306, 0
        %v318 = vsel %vm314, %v313, 0
        %320 = vmatprep.subr.mxu0 0.0
        %321 = vmatpush1.xpose.msra.mxu0 0.0
        %322 = vmatprep.subr.mxu0 0.0
        %323 = vmatpush1.xpose.msra.mxu0 0.0
        %324 = vmatprep.subr.mxu0 0.0
        %325 = vmatpush1.xpose.msra.mxu0 0.0
        %326 = vmatprep.subr.mxu0 0.0
        %327 = vmatpush1.xpose.msra.mxu0 0.0
        %328 = vmatprep.subr.mxu0 0.0
        %329 = vmatpush1.xpose.msra.mxu0 0.0
        %330 = vmatprep.subr.mxu0 0.0
        %331 = vmatpush1.xpose.msra.mxu0 0.0
        %332 = vmatprep.subr.mxu0 0.0
        %333 = vmatpush1.xpose.msra.mxu0 0.0
        %334 = vmatprep.subr.mxu0 0.0
        %335 = vmatpush1.xpose.msra.mxu0 0.0
        %336 = vmatprep.subr.mxu0 0.0
        %337 = vmatpush1.xpose.msra.mxu0 0.0
        %338 = vmatprep.subr.mxu0 0.0
        %339 = vmatpush1.xpose.msra.mxu0 0.0
        %340 = vmatprep.subr.mxu0 0.0
        %341 = vmatpush1.xpose.msra.mxu0 0.0
        %342 = vmatprep.subr.mxu0 0.0
        %343 = vmatpush1.xpose.msra.mxu0 0.0
        %344 = vmatprep.subr.mxu0 0.0
        %345 = vmatpush1.xpose.msra.mxu0 0.0
        %346 = vmatprep.subr.mxu0 0.0
        %347 = vmatpush1.xpose.msra.mxu0 0.0
        %348 = vmatprep.subr.mxu0 0.0
        %349 = vmatpush1.xpose.msra.mxu0 0.0
        %350 = vmatprep.subr.mxu0 0.0
        %351 = vmatpush1.xpose.msra.mxu0 %v318
        %352 = vmatprep.subr.mxu0 0.0
        %353 = vmatpush2.xpose.msra.mxu0 0.0
        %354 = vmatprep.subr.mxu0 0.0
        %355 = vmatpush2.xpose.msra.mxu0 0.0
        %356 = vmatprep.subr.mxu0 0.0
        %357 = vmatpush2.xpose.msra.mxu0 0.0
        %358 = vmatprep.subr.mxu0 0.0
        %359 = vmatpush2.xpose.msra.mxu0 0.0
        %360 = vmatprep.subr.mxu0 0.0
        %361 = vmatpush2.xpose.msra.mxu0 0.0
        %362 = vmatprep.subr.mxu0 0.0
        %363 = vmatpush2.xpose.msra.mxu0 0.0
        %364 = vmatprep.subr.mxu0 0.0
        %365 = vmatpush2.xpose.msra.mxu0 0.0
        %366 = vmatprep.subr.mxu0 0.0
        %367 = vmatpush2.xpose.msra.mxu0 0.0
        %368 = vmatprep.subr.mxu0 0.0
        %369 = vmatpush2.xpose.msra.mxu0 0.0
        %370 = vmatprep.subr.mxu0 0.0
        %371 = vmatpush2.xpose.msra.mxu0 0.0
        %372 = vmatprep.subr.mxu0 0.0
        %373 = vmatpush2.xpose.msra.mxu0 0.0
        %374 = vmatprep.subr.mxu0 0.0
        %375 = vmatpush2.xpose.msra.mxu0 0.0
        %376 = vmatprep.subr.mxu0 0.0
        %377 = vmatpush2.xpose.msra.mxu0 0.0
        %378 = vmatprep.subr.mxu0 0.0
        %379 = vmatpush2.xpose.msra.mxu0 0.0
        %380 = vmatprep.subr.mxu0 0.0
        %381 = vmatpush2.xpose.msra.mxu0 0.0
        %382 = vmatprep.subr.mxu0 0.0
        %383 = vmatpush2.xpose.msra.mxu0 0.0
        %384 = vmatprep.mubr.f32.mxu0 0.0
        %385 = vmatmul.mubr.f32.gmra.mxu0 %v316
        %v386 = vpop.f32.mrf.mxu0
        %v387 = vadd.f32 0.0, %v386
        %v388 = vpop.f32.mrf.mxu0
        %389 = vdwg.mxu0
        %v390 = vsel %vm314, %v387, -inf
        %391 = vmax.xlane.f32.xlu0 %v390
        %v392 = vpop.xlane.xlu0 %391
        %v393 = vsub.f32 %v387, %v392
        %v394 = vmul.f32 %v393, 1.442695
        %v395 = vpow.pop %v394
        %v396 = vsel %vm314, %v395, 0.0
        %397 = vadd.xlane.f32.xlu0 %v396
        %v398 = vpop.xlane.xlu0 %397
        %v399 = vrcp.pop %v398
        %v400 = vmul.f32 %v395, %v399
        %401 = vrot.lane.b32.xlu0 %v303, 64
        %v402 = vpop.permute.xlu0 %401
        %v405 = vsel %vm314, %v400, 0
        %407 = vmatprep.subr.mxu0 0.0
        %408 = vmatpush1.msra.mxu0 0.0
        %409 = vmatprep.subr.mxu0 0.0
        %410 = vmatpush1.msra.mxu0 0.0
        %411 = vmatprep.subr.mxu0 0.0
        %412 = vmatpush1.msra.mxu0 0.0
        %413 = vmatprep.subr.mxu0 0.0
        %414 = vmatpush1.msra.mxu0 0.0
        %415 = vmatprep.subr.mxu0 0.0
        %416 = vmatpush1.msra.mxu0 0.0
        %417 = vmatprep.subr.mxu0 0.0
        %418 = vmatpush1.msra.mxu0 0.0
        %419 = vmatprep.subr.mxu0 0.0
        %420 = vmatpush1.msra.mxu0 0.0
        %421 = vmatprep.subr.mxu0 0.0
        %422 = vmatpush1.msra.mxu0 0.0
        %423 = vmatprep.subr.mxu0 0.0
        %424 = vmatpush1.msra.mxu0 0.0
        %425 = vmatprep.subr.mxu0 0.0
        %426 = vmatpush1.msra.mxu0 0.0
        %427 = vmatprep.subr.mxu0 0.0
        %428 = vmatpush1.msra.mxu0 0.0
        %429 = vmatprep.subr.mxu0 0.0
        %430 = vmatpush1.msra.mxu0 0.0
        %431 = vmatprep.subr.mxu0 0.0
        %432 = vmatpush1.msra.mxu0 0.0
        %433 = vmatprep.subr.mxu0 0.0
        %434 = vmatpush1.msra.mxu0 0.0
        %435 = vmatprep.subr.mxu0 0.0
        %436 = vmatpush1.msra.mxu0 0.0
        %437 = vmatprep.subr.mxu0 0.0
        %438 = vmatpush1.msra.mxu0 %v402
        %439 = vmatprep.subr.mxu0 0.0
        %440 = vmatpush2.msra.mxu0 0.0
        %441 = vmatprep.subr.mxu0 0.0
        %442 = vmatpush2.msra.mxu0 0.0
        %443 = vmatprep.subr.mxu0 0.0
        %444 = vmatpush2.msra.mxu0 0.0
        %445 = vmatprep.subr.mxu0 0.0
        %446 = vmatpush2.msra.mxu0 0.0
        %447 = vmatprep.subr.mxu0 0.0
        %448 = vmatpush2.msra.mxu0 0.0
        %449 = vmatprep.subr.mxu0 0.0
        %450 = vmatpush2.msra.mxu0 0.0
        %451 = vmatprep.subr.mxu0 0.0
        %452 = vmatpush2.msra.mxu0 0.0
        %453 = vmatprep.subr.mxu0 0.0
        %454 = vmatpush2.msra.mxu0 0.0
        %455 = vmatprep.subr.mxu0 0.0
        %456 = vmatpush2.msra.mxu0 0.0
        %457 = vmatprep.subr.mxu0 0.0
        %458 = vmatpush2.msra.mxu0 0.0
        %459 = vmatprep.subr.mxu0 0.0
        %460 = vmatpush2.msra.mxu0 0.0
        %461 = vmatprep.subr.mxu0 0.0
        %462 = vmatpush2.msra.mxu0 0.0
        %463 = vmatprep.subr.mxu0 0.0
        %464 = vmatpush2.msra.mxu0 0.0
        %465 = vmatprep.subr.mxu0 0.0
        %466 = vmatpush2.msra.mxu0 0.0
        %467 = vmatprep.subr.mxu0 0.0
        %468 = vmatpush2.msra.mxu0 0.0
        %469 = vmatprep.subr.mxu0 0.0
        %470 = vmatpush2.msra.mxu0 0.0
        %471 = vmatprep.mubr.f32.mxu0 0.0
        %472 = vmatmul.mubr.f32.gmra.mxu0 %v405
        %v473 = vpop.f32.mrf.mxu0
        %v474 = vadd.f32 0.0, %v473
        %v475 = vpop.f32.mrf.mxu0
        %476 = vdwg.mxu0
        %477 = vrot.lane.b32.xlu0 %v306, 120
        %v478 = vpop.permute.xlu0 %477
        %479 = vrot.lane.b32.xlu0 %v303, 88
        %v480 = vpop.permute.xlu0 %479
        %v481 = vsel %vm314, %v478, 0
        %v483 = vsel %vm314, %v480, 0
        %485 = vmatprep.subr.mxu0 0.0
        %486 = vmatpush1.xpose.msra.mxu0 0.0
        %487 = vmatprep.subr.mxu0 0.0
        %488 = vmatpush1.xpose.msra.mxu0 0.0
        %489 = vmatprep.subr.mxu0 0.0
        %490 = vmatpush1.xpose.msra.mxu0 0.0
        %491 = vmatprep.subr.mxu0 0.0
        %492 = vmatpush1.xpose.msra.mxu0 0.0
        %493 = vmatprep.subr.mxu0 0.0
        %494 = vmatpush1.xpose.msra.mxu0 0.0
        %495 = vmatprep.subr.mxu0 0.0
        %496 = vmatpush1.xpose.msra.mxu0 0.0
        %497 = vmatprep.subr.mxu0 0.0
        %498 = vmatpush1.xpose.msra.mxu0 0.0
        %499 = vmatprep.subr.mxu0 0.0
        %500 = vmatpush1.xpose.msra.mxu0 0.0
        %501 = vmatprep.subr.mxu0 0.0
        %502 = vmatpush1.xpose.msra.mxu0 0.0
        %503 = vmatprep.subr.mxu0 0.0
        %504 = vmatpush1.xpose.msra.mxu0 0.0
        %505 = vmatprep.subr.mxu0 0.0
        %506 = vmatpush1.xpose.msra.mxu0 0.0
        %507 = vmatprep.subr.mxu0 0.0
        %508 = vmatpush1.xpose.msra.mxu0 0.0
        %509 = vmatprep.subr.mxu0 0.0
        %510 = vmatpush1.xpose.msra.mxu0 0.0
        %511 = vmatprep.subr.mxu0 0.0
        %512 = vmatpush1.xpose.msra.mxu0 0.0
        %513 = vmatprep.subr.mxu0 0.0
        %514 = vmatpush1.xpose.msra.mxu0 0.0
        %515 = vmatprep.subr.mxu0 0.0
        %516 = vmatpush1.xpose.msra.mxu0 %v483
        %517 = vmatprep.subr.mxu0 0.0
        %518 = vmatpush2.xpose.msra.mxu0 0.0
        %519 = vmatprep.subr.mxu0 0.0
        %520 = vmatpush2.xpose.msra.mxu0 0.0
        %521 = vmatprep.subr.mxu0 0.0
        %522 = vmatpush2.xpose.msra.mxu0 0.0
        %523 = vmatprep.subr.mxu0 0.0
        %524 = vmatpush2.xpose.msra.mxu0 0.0
        %525 = vmatprep.subr.mxu0 0.0
        %526 = vmatpush2.xpose.msra.mxu0 0.0
        %527 = vmatprep.subr.mxu0 0.0
        %528 = vmatpush2.xpose.msra.mxu0 0.0
        %529 = vmatprep.subr.mxu0 0.0
        %530 = vmatpush2.xpose.msra.mxu0 0.0
        %531 = vmatprep.subr.mxu0 0.0
        %532 = vmatpush2.xpose.msra.mxu0 0.0
        %533 = vmatprep.subr.mxu0 0.0
        %534 = vmatpush2.xpose.msra.mxu0 0.0
        %535 = vmatprep.subr.mxu0 0.0
        %536 = vmatpush2.xpose.msra.mxu0 0.0
        %537 = vmatprep.subr.mxu0 0.0
        %538 = vmatpush2.xpose.msra.mxu0 0.0
        %539 = vmatprep.subr.mxu0 0.0
        %540 = vmatpush2.xpose.msra.mxu0 0.0
        %541 = vmatprep.subr.mxu0 0.0
        %542 = vmatpush2.xpose.msra.mxu0 0.0
        %543 = vmatprep.subr.mxu0 0.0
        %544 = vmatpush2.xpose.msra.mxu0 0.0
        %545 = vmatprep.subr.mxu0 0.0
        %546 = vmatpush2.xpose.msra.mxu0 0.0
        %547 = vmatprep.subr.mxu0 0.0
        %548 = vmatpush2.xpose.msra.mxu0 0.0
        %549 = vmatprep.mubr.f32.mxu0 0.0
        %550 = vmatmul.mubr.f32.gmra.mxu0 %v481
        %v551 = vpop.f32.mrf.mxu0
        %v552 = vadd.f32 0.0, %v551
        %v553 = vpop.f32.mrf.mxu0
        %554 = vdwg.mxu0
        %v555 = vsel %vm314, %v552, -inf
        %556 = vmax.xlane.f32.xlu0 %v555
        %v557 = vpop.xlane.xlu0 %556
        %v558 = vsub.f32 %v552, %v557
        %v559 = vmul.f32 %v558, 1.442695
        %v560 = vpow.pop %v559
        %v561 = vsel %vm314, %v560, 0.0
        %562 = vadd.xlane.f32.xlu0 %v561
        %v563 = vpop.xlane.xlu0 %562
        %v564 = vrcp.pop %v563
        %v565 = vmul.f32 %v560, %v564
        %566 = vrot.lane.b32.xlu0 %v303, 56
        %v567 = vpop.permute.xlu0 %566
        %v570 = vsel %vm314, %v565, 0
        %572 = vmatprep.subr.mxu0 0.0
        %573 = vmatpush1.msra.mxu0 0.0
        %574 = vmatprep.subr.mxu0 0.0
        %575 = vmatpush1.msra.mxu0 0.0
        %576 = vmatprep.subr.mxu0 0.0
        %577 = vmatpush1.msra.mxu0 0.0
        %578 = vmatprep.subr.mxu0 0.0
        %579 = vmatpush1.msra.mxu0 0.0
        %580 = vmatprep.subr.mxu0 0.0
        %581 = vmatpush1.msra.mxu0 0.0
        %582 = vmatprep.subr.mxu0 0.0
        %583 = vmatpush1.msra.mxu0 0.0
        %584 = vmatprep.subr.mxu0 0.0
        %585 = vmatpush1.msra.mxu0 0.0
        %586 = vmatprep.subr.mxu0 0.0
        %587 = vmatpush1.msra.mxu0 0.0
        %588 = vmatprep.subr.mxu0 0.0
        %589 = vmatpush1.msra.mxu0 0.0
        %590 = vmatprep.subr.mxu0 0.0
        %591 = vmatpush1.msra.mxu0 0.0
        %592 = vmatprep.subr.mxu0 0.0
        %593 = vmatpush1.msra.mxu0 0.0
        %594 = vmatprep.subr.mxu0 0.0
        %595 = vmatpush1.msra.mxu0 0.0
        %596 = vmatprep.subr.mxu0 0.0
        %597 = vmatpush1.msra.mxu0 0.0
        %598 = vmatprep.subr.mxu0 0.0
        %599 = vmatpush1.msra.mxu0 0.0
        %600 = vmatprep.subr.mxu0 0.0
        %601 = vmatpush1.msra.mxu0 0.0
        %602 = vmatprep.subr.mxu0 0.0
        %603 = vmatpush1.msra.mxu0 %v567
        %604 = vmatprep.subr.mxu0 0.0
        %605 = vmatpush2.msra.mxu0 0.0
        %606 = vmatprep.subr.mxu0 0.0
        %607 = vmatpush2.msra.mxu0 0.0
        %608 = vmatprep.subr.mxu0 0.0
        %609 = vmatpush2.msra.mxu0 0.0
        %610 = vmatprep.subr.mxu0 0.0
        %611 = vmatpush2.msra.mxu0 0.0
        %612 = vmatprep.subr.mxu0 0.0
        %613 = vmatpush2.msra.mxu0 0.0
        %614 = vmatprep.subr.mxu0 0.0
        %615 = vmatpush2.msra.mxu0 0.0
        %616 = vmatprep.subr.mxu0 0.0
        %617 = vmatpush2.msra.mxu0 0.0
        %618 = vmatprep.subr.mxu0 0.0
        %619 = vmatpush2.msra.mxu0 0.0
        %620 = vmatprep.subr.mxu0 0.0
        %621 = vmatpush2.msra.mxu0 0.0
        %622 = vmatprep.subr.mxu0 0.0
        %623 = vmatpush2.msra.mxu0 0.0
        %624 = vmatprep.subr.mxu0 0.0
        %625 = vmatpush2.msra.mxu0 0.0
        %626 = vmatprep.subr.mxu0 0.0
        %627 = vmatpush2.msra.mxu0 0.0
        %628 = vmatprep.subr.mxu0 0.0
        %629 = vmatpush2.msra.mxu0 0.0
        %630 = vmatprep.subr.mxu0 0.0
        %631 = vmatpush2.msra.mxu0 0.0
        %632 = vmatprep.subr.mxu0 0.0
        %633 = vmatpush2.msra.mxu0 0.0
        %634 = vmatprep.subr.mxu0 0.0
        %635 = vmatpush2.msra.mxu0 0.0
        %636 = vmatprep.mubr.f32.mxu0 0.0
        %637 = vmatmul.mubr.f32.gmra.mxu0 %v570
        %v638 = vpop.f32.mrf.mxu0
        %v639 = vadd.f32 0.0, %v638
        %v640 = vpop.f32.mrf.mxu0
        %641 = vdwg.mxu0
        %v643 = vsel %vm314, %v639, 0
        %645 = vmatprep.subr.mxu0 0.0
        %646 = vmatpush1.msra.mxu0 0.0
        %647 = vmatprep.subr.mxu0 0.0
        %648 = vmatpush1.msra.mxu0 0.0
        %649 = vmatprep.subr.mxu0 0.0
        %650 = vmatpush1.msra.mxu0 0.0
        %651 = vmatprep.subr.mxu0 0.0
        %652 = vmatpush1.msra.mxu0 0.0
        %653 = vmatprep.subr.mxu0 0.0
        %654 = vmatpush1.msra.mxu0 0.0
        %655 = vmatprep.subr.mxu0 0.0
        %656 = vmatpush1.msra.mxu0 0.0
        %657 = vmatprep.subr.mxu0 0.0
        %658 = vmatpush1.msra.mxu0 0.0
        %659 = vmatprep.subr.mxu0 0.0
        %660 = vmatpush1.msra.mxu0 0.0
        %661 = vmatprep.subr.mxu0 0.0
        %662 = vmatpush1.msra.mxu0 0.0
        %663 = vmatprep.subr.mxu0 0.0
        %664 = vmatpush1.msra.mxu0 0.0
        %665 = vmatprep.subr.mxu0 0.0
        %666 = vmatpush1.msra.mxu0 0.0
        %667 = vmatprep.subr.mxu0 0.0
        %668 = vmatpush1.msra.mxu0 0.0
        %669 = vmatprep.subr.mxu0 0.0
        %670 = vmatpush1.msra.mxu0 0.0
        %671 = vmatprep.subr.mxu0 0.0
        %672 = vmatpush1.msra.mxu0 0.0
        %673 = vmatprep.subr.mxu0 0.0
        %674 = vmatpush1.msra.mxu0 0.0
        %675 = vmatprep.subr.mxu0 0.0
        %676 = vmatpush1.msra.mxu0 %v308
        %677 = vmatprep.subr.mxu0 0.0
        %678 = vmatpush2.msra.mxu0 0.0
        %679 = vmatprep.subr.mxu0 0.0
        %680 = vmatpush2.msra.mxu0 0.0
        %681 = vmatprep.subr.mxu0 0.0
        %682 = vmatpush2.msra.mxu0 0.0
        %683 = vmatprep.subr.mxu0 0.0
        %684 = vmatpush2.msra.mxu0 0.0
        %685 = vmatprep.subr.mxu0 0.0
        %686 = vmatpush2.msra.mxu0 0.0
        %687 = vmatprep.subr.mxu0 0.0
        %688 = vmatpush2.msra.mxu0 0.0
        %689 = vmatprep.subr.mxu0 0.0
        %690 = vmatpush2.msra.mxu0 0.0
        %691 = vmatprep.subr.mxu0 0.0
        %692 = vmatpush2.msra.mxu0 0.0
        %693 = vmatprep.subr.mxu0 0.0
        %694 = vmatpush2.msra.mxu0 0.0
        %695 = vmatprep.subr.mxu0 0.0
        %696 = vmatpush2.msra.mxu0 0.0
        %697 = vmatprep.subr.mxu0 0.0
        %698 = vmatpush2.msra.mxu0 0.0
        %699 = vmatprep.subr.mxu0 0.0
        %700 = vmatpush2.msra.mxu0 0.0
        %701 = vmatprep.subr.mxu0 0.0
        %702 = vmatpush2.msra.mxu0 0.0
        %703 = vmatprep.subr.mxu0 0.0
        %704 = vmatpush2.msra.mxu0 0.0
        %705 = vmatprep.subr.mxu0 0.0
        %706 = vmatpush2.msra.mxu0 0.0
        %707 = vmatprep.subr.mxu0 0.0
        %708 = vmatpush2.msra.mxu0 0.0
        %709 = vmatprep.mubr.f32.mxu0 0.0
        %710 = vmatmul.mubr.f32.gmra.mxu0 %v643
        %v711 = vpop.f32.mrf.mxu0
        %v712 = vadd.f32 0.0, %v711
        %v713 = vpop.f32.mrf.mxu0
        %714 = vdwg.mxu0
        %v716 = vsel %vm314, %v474, 0
        %718 = vmatprep.subr.mxu0 0.0
        %719 = vmatpush1.msra.mxu0 0.0
        %720 = vmatprep.subr.mxu0 0.0
        %721 = vmatpush1.msra.mxu0 0.0
        %722 = vmatprep.subr.mxu0 0.0
        %723 = vmatpush1.msra.mxu0 0.0
        %724 = vmatprep.subr.mxu0 0.0
        %725 = vmatpush1.msra.mxu0 0.0
        %726 = vmatprep.subr.mxu0 0.0
        %727 = vmatpush1.msra.mxu0 0.0
        %728 = vmatprep.subr.mxu0 0.0
        %729 = vmatpush1.msra.mxu0 0.0
        %730 = vmatprep.subr.mxu0 0.0
        %731 = vmatpush1.msra.mxu0 0.0
        %732 = vmatprep.subr.mxu0 0.0
        %733 = vmatpush1.msra.mxu0 0.0
        %734 = vmatprep.subr.mxu0 0.0
        %735 = vmatpush1.msra.mxu0 0.0
        %736 = vmatprep.subr.mxu0 0.0
        %737 = vmatpush1.msra.mxu0 0.0
        %738 = vmatprep.subr.mxu0 0.0
        %739 = vmatpush1.msra.mxu0 0.0
        %740 = vmatprep.subr.mxu0 0.0
        %741 = vmatpush1.msra.mxu0 0.0
        %742 = vmatprep.subr.mxu0 0.0
        %743 = vmatpush1.msra.mxu0 0.0
        %744 = vmatprep.subr.mxu0 0.0
        %745 = vmatpush1.msra.mxu0 0.0
        %746 = vmatprep.subr.mxu0 0.0
        %747 = vmatpush1.msra.mxu0 0.0
        %748 = vmatprep.subr.mxu0 0.0
        %749 = vmatpush1.msra.mxu0 %v307
        %750 = vmatprep.subr.mxu0 0.0
        %751 = vmatpush2.msra.mxu0 0.0
        %752 = vmatprep.subr.mxu0 0.0
        %753 = vmatpush2.msra.mxu0 0.0
        %754 = vmatprep.subr.mxu0 0.0
        %755 = vmatpush2.msra.mxu0 0.0
        %756 = vmatprep.subr.mxu0 0.0
        %757 = vmatpush2.msra.mxu0 0.0
        %758 = vmatprep.subr.mxu0 0.0
        %759 = vmatpush2.msra.mxu0 0.0
        %760 = vmatprep.subr.mxu0 0.0
        %761 = vmatpush2.msra.mxu0 0.0
        %762 = vmatprep.subr.mxu0 0.0
        %763 = vmatpush2.msra.mxu0 0.0
        %764 = vmatprep.subr.mxu0 0.0
        %765 = vmatpush2.msra.mxu0 0.0
        %766 = vmatprep.subr.mxu0 0.0
        %767 = vmatpush2.msra.mxu0 0.0
        %768 = vmatprep.subr.mxu0 0.0
        %769 = vmatpush2.msra.mxu0 0.0
        %770 = vmatprep.subr.mxu0 0.0
        %771 = vmatpush2.msra.mxu0 0.0
        %772 = vmatprep.subr.mxu0 0.0
        %773 = vmatpush2.msra.mxu0 0.0
        %774 = vmatprep.subr.mxu0 0.0
        %775 = vmatpush2.msra.mxu0 0.0
        %776 = vmatprep.subr.mxu0 0.0
        %777 = vmatpush2.msra.mxu0 0.0
        %778 = vmatprep.subr.mxu0 0.0
        %779 = vmatpush2.msra.mxu0 0.0
        %780 = vmatprep.subr.mxu0 0.0
        %781 = vmatpush2.msra.mxu0 0.0
        %782 = vmatprep.mubr.f32.mxu0 0.0
        %783 = vmatmul.mubr.f32.gmra.mxu0 %v716
        %v784 = vpop.f32.mrf.mxu0
        %v785 = vadd.f32 %v712, %v784
        %v786 = vpop.f32.mrf.mxu0
        %787 = vdwg.mxu0
        %788 = vrot.lane.b32.xlu0 %v306, 112
        %v789 = vpop.permute.xlu0 %788
        %790 = vrot.lane.b32.xlu0 %v303, 80
        %v791 = vpop.permute.xlu0 %790
        %v792 = vsel %vm314, %v789, 0
        %v794 = vsel %vm314, %v791, 0
        %796 = vmatprep.subr.mxu0 0.0
        %797 = vmatpush1.xpose.msra.mxu0 0.0
        %798 = vmatprep.subr.mxu0 0.0
        %799 = vmatpush1.xpose.msra.mxu0 0.0
        %800 = vmatprep.subr.mxu0 0.0
        %801 = vmatpush1.xpose.msra.mxu0 0.0
        %802 = vmatprep.subr.mxu0 0.0
        %803 = vmatpush1.xpose.msra.mxu0 0.0
        %804 = vmatprep.subr.mxu0 0.0
        %805 = vmatpush1.xpose.msra.mxu0 0.0
        %806 = vmatprep.subr.mxu0 0.0
        %807 = vmatpush1.xpose.msra.mxu0 0.0
        %808 = vmatprep.subr.mxu0 0.0
        %809 = vmatpush1.xpose.msra.mxu0 0.0
        %810 = vmatprep.subr.mxu0 0.0
        %811 = vmatpush1.xpose.msra.mxu0 0.0
        %812 = vmatprep.subr.mxu0 0.0
        %813 = vmatpush1.xpose.msra.mxu0 0.0
        %814 = vmatprep.subr.mxu0 0.0
        %815 = vmatpush1.xpose.msra.mxu0 0.0
        %816 = vmatprep.subr.mxu0 0.0
        %817 = vmatpush1.xpose.msra.mxu0 0.0
        %818 = vmatprep.subr.mxu0 0.0
        %819 = vmatpush1.xpose.msra.mxu0 0.0
        %820 = vmatprep.subr.mxu0 0.0
        %821 = vmatpush1.xpose.msra.mxu0 0.0
        %822 = vmatprep.subr.mxu0 0.0
        %823 = vmatpush1.xpose.msra.mxu0 0.0
        %824 = vmatprep.subr.mxu0 0.0
        %825 = vmatpush1.xpose.msra.mxu0 0.0
        %826 = vmatprep.subr.mxu0 0.0
        %827 = vmatpush1.xpose.msra.mxu0 %v794
        %828 = vmatprep.subr.mxu0 0.0
        %829 = vmatpush2.xpose.msra.mxu0 0.0
        %830 = vmatprep.subr.mxu0 0.0
        %831 = vmatpush2.xpose.msra.mxu0 0.0
        %832 = vmatprep.subr.mxu0 0.0
        %833 = vmatpush2.xpose.msra.mxu0 0.0
        %834 = vmatprep.subr.mxu0 0.0
        %835 = vmatpush2.xpose.msra.mxu0 0.0
        %836 = vmatprep.subr.mxu0 0.0
        %837 = vmatpush2.xpose.msra.mxu0 0.0
        %838 = vmatprep.subr.mxu0 0.0
        %839 = vmatpush2.xpose.msra.mxu0 0.0
        %840 = vmatprep.subr.mxu0 0.0
        %841 = vmatpush2.xpose.msra.mxu0 0.0
        %842 = vmatprep.subr.mxu0 0.0
        %843 = vmatpush2.xpose.msra.mxu0 0.0
        %844 = vmatprep.subr.mxu0 0.0
        %845 = vmatpush2.xpose.msra.mxu0 0.0
        %846 = vmatprep.subr.mxu0 0.0
        %847 = vmatpush2.xpose.msra.mxu0 0.0
        %848 = vmatprep.subr.mxu0 0.0
        %849 = vmatpush2.xpose.msra.mxu0 0.0
        %850 = vmatprep.subr.mxu0 0.0
        %851 = vmatpush2.xpose.msra.mxu0 0.0
        %852 = vmatprep.subr.mxu0 0.0
        %853 = vmatpush2.xpose.msra.mxu0 0.0
        %854 = vmatprep.subr.mxu0 0.0
        %855 = vmatpush2.xpose.msra.mxu0 0.0
        %856 = vmatprep.subr.mxu0 0.0
        %857 = vmatpush2.xpose.msra.mxu0 0.0
        %858 = vmatprep.subr.mxu0 0.0
        %859 = vmatpush2.xpose.msra.mxu0 0.0
        %860 = vmatprep.mubr.f32.mxu0 0.0
        %861 = vmatmul.mubr.f32.gmra.mxu0 %v792
        %v862 = vpop.f32.mrf.mxu0
        %v863 = vadd.f32 0.0, %v862
        %v864 = vpop.f32.mrf.mxu0
        %865 = vdwg.mxu0
        %v866 = vsel %vm314, %v863, -inf
        %867 = vmax.xlane.f32.xlu0 %v866
        %v868 = vpop.xlane.xlu0 %867
        %v869 = vsub.f32 %v863, %v868
        %v870 = vmul.f32 %v869, 1.442695
        %v871 = vpow.pop %v870
        %v872 = vsel %vm314, %v871, 0.0
        %873 = vadd.xlane.f32.xlu0 %v872
        %v874 = vpop.xlane.xlu0 %873
        %v875 = vrcp.pop %v874
        %v876 = vmul.f32 %v871, %v875
        %877 = vrot.lane.b32.xlu0 %v303, 48
        %v878 = vpop.permute.xlu0 %877
        %v881 = vsel %vm314, %v876, 0
        %883 = vmatprep.subr.mxu0 0.0
        %884 = vmatpush1.msra.mxu0 0.0
        %885 = vmatprep.subr.mxu0 0.0
        %886 = vmatpush1.msra.mxu0 0.0
        %887 = vmatprep.subr.mxu0 0.0
        %888 = vmatpush1.msra.mxu0 0.0
        %889 = vmatprep.subr.mxu0 0.0
        %890 = vmatpush1.msra.mxu0 0.0
        %891 = vmatprep.subr.mxu0 0.0
        %892 = vmatpush1.msra.mxu0 0.0
        %893 = vmatprep.subr.mxu0 0.0
        %894 = vmatpush1.msra.mxu0 0.0
        %895 = vmatprep.subr.mxu0 0.0
        %896 = vmatpush1.msra.mxu0 0.0
        %897 = vmatprep.subr.mxu0 0.0
        %898 = vmatpush1.msra.mxu0 0.0
        %899 = vmatprep.subr.mxu0 0.0
        %900 = vmatpush1.msra.mxu0 0.0
        %901 = vmatprep.subr.mxu0 0.0
        %902 = vmatpush1.msra.mxu0 0.0
        %903 = vmatprep.subr.mxu0 0.0
        %904 = vmatpush1.msra.mxu0 0.0
        %905 = vmatprep.subr.mxu0 0.0
        %906 = vmatpush1.msra.mxu0 0.0
        %907 = vmatprep.subr.mxu0 0.0
        %908 = vmatpush1.msra.mxu0 0.0
        %909 = vmatprep.subr.mxu0 0.0
        %910 = vmatpush1.msra.mxu0 0.0
        %911 = vmatprep.subr.mxu0 0.0
        %912 = vmatpush1.msra.mxu0 0.0
        %913 = vmatprep.subr.mxu0 0.0
        %914 = vmatpush1.msra.mxu0 %v878
        %915 = vmatprep.subr.mxu0 0.0
        %916 = vmatpush2.msra.mxu0 0.0
        %917 = vmatprep.subr.mxu0 0.0
        %918 = vmatpush2.msra.mxu0 0.0
        %919 = vmatprep.subr.mxu0 0.0
        %920 = vmatpush2.msra.mxu0 0.0
        %921 = vmatprep.subr.mxu0 0.0
        %922 = vmatpush2.msra.mxu0 0.0
        %923 = vmatprep.subr.mxu0 0.0
        %924 = vmatpush2.msra.mxu0 0.0
        %925 = vmatprep.subr.mxu0 0.0
        %926 = vmatpush2.msra.mxu0 0.0
        %927 = vmatprep.subr.mxu0 0.0
        %928 = vmatpush2.msra.mxu0 0.0
        %929 = vmatprep.subr.mxu0 0.0
        %930 = vmatpush2.msra.mxu0 0.0
        %931 = vmatprep.subr.mxu0 0.0
        %932 = vmatpush2.msra.mxu0 0.0
        %933 = vmatprep.subr.mxu0 0.0
        %934 = vmatpush2.msra.mxu0 0.0
        %935 = vmatprep.subr.mxu0 0.0
        %936 = vmatpush2.msra.mxu0 0.0
        %937 = vmatprep.subr.mxu0 0.0
        %938 = vmatpush2.msra.mxu0 0.0
        %939 = vmatprep.subr.mxu0 0.0
        %940 = vmatpush2.msra.mxu0 0.0
        %941 = vmatprep.subr.mxu0 0.0
        %942 = vmatpush2.msra.mxu0 0.0
        %943 = vmatprep.subr.mxu0 0.0
        %944 = vmatpush2.msra.mxu0 0.0
        %945 = vmatprep.subr.mxu0 0.0
        %946 = vmatpush2.msra.mxu0 0.0
        %947 = vmatprep.mubr.f32.mxu0 0.0
        %948 = vmatmul.mubr.f32.gmra.mxu0 %v881
        %v949 = vpop.f32.mrf.mxu0
        %v950 = vadd.f32 0.0, %v949
        %v951 = vpop.f32.mrf.mxu0
        %952 = vdwg.mxu0
        %v954 = vsel %vm314, %v950, 0
        %956 = vmatprep.subr.mxu0 0.0
        %957 = vmatpush1.msra.mxu0 0.0
        %958 = vmatprep.subr.mxu0 0.0
        %959 = vmatpush1.msra.mxu0 0.0
        %960 = vmatprep.subr.mxu0 0.0
        %961 = vmatpush1.msra.mxu0 0.0
        %962 = vmatprep.subr.mxu0 0.0
        %963 = vmatpush1.msra.mxu0 0.0
        %964 = vmatprep.subr.mxu0 0.0
        %965 = vmatpush1.msra.mxu0 0.0
        %966 = vmatprep.subr.mxu0 0.0
        %967 = vmatpush1.msra.mxu0 0.0
        %968 = vmatprep.subr.mxu0 0.0
        %969 = vmatpush1.msra.mxu0 0.0
        %970 = vmatprep.subr.mxu0 0.0
        %971 = vmatpush1.msra.mxu0 0.0
        %972 = vmatprep.subr.mxu0 0.0
        %973 = vmatpush1.msra.mxu0 0.0
        %974 = vmatprep.subr.mxu0 0.0
        %975 = vmatpush1.msra.mxu0 0.0
        %976 = vmatprep.subr.mxu0 0.0
        %977 = vmatpush1.msra.mxu0 0.0
        %978 = vmatprep.subr.mxu0 0.0
        %979 = vmatpush1.msra.mxu0 0.0
        %980 = vmatprep.subr.mxu0 0.0
        %981 = vmatpush1.msra.mxu0 0.0
        %982 = vmatprep.subr.mxu0 0.0
        %983 = vmatpush1.msra.mxu0 0.0
        %984 = vmatprep.subr.mxu0 0.0
        %985 = vmatpush1.msra.mxu0 0.0
        %986 = vmatprep.subr.mxu0 0.0
        %987 = vmatpush1.msra.mxu0 %v309
        %988 = vmatprep.subr.mxu0 0.0
        %989 = vmatpush2.msra.mxu0 0.0
        %990 = vmatprep.subr.mxu0 0.0
        %991 = vmatpush2.msra.mxu0 0.0
        %992 = vmatprep.subr.mxu0 0.0
        %993 = vmatpush2.msra.mxu0 0.0
        %994 = vmatprep.subr.mxu0 0.0
        %995 = vmatpush2.msra.mxu0 0.0
        %996 = vmatprep.subr.mxu0 0.0
        %997 = vmatpush2.msra.mxu0 0.0
        %998 = vmatprep.subr.mxu0 0.0
        %999 = vmatpush2.msra.mxu0 0.0
        %1000 = vmatprep.subr.mxu0 0.0
        %1001 = vmatpush2.msra.mxu0 0.0
        %1002 = vmatprep.subr.mxu0 0.0
        %1003 = vmatpush2.msra.mxu0 0.0
        %1004 = vmatprep.subr.mxu0 0.0
        %1005 = vmatpush2.msra.mxu0 0.0
        %1006 = vmatprep.subr.mxu0 0.0
        %1007 = vmatpush2.msra.mxu0 0.0
        %1008 = vmatprep.subr.mxu0 0.0
        %1009 = vmatpush2.msra.mxu0 0.0
        %1010 = vmatprep.subr.mxu0 0.0
        %1011 = vmatpush2.msra.mxu0 0.0
        %1012 = vmatprep.subr.mxu0 0.0
        %1013 = vmatpush2.msra.mxu0 0.0
        %1014 = vmatprep.subr.mxu0 0.0
        %1015 = vmatpush2.msra.mxu0 0.0
        %1016 = vmatprep.subr.mxu0 0.0
        %1017 = vmatpush2.msra.mxu0 0.0
        %1018 = vmatprep.subr.mxu0 0.0
        %1019 = vmatpush2.msra.mxu0 0.0
        %1020 = vmatprep.mubr.f32.mxu0 0.0
        %1021 = vmatmul.mubr.f32.gmra.mxu0 %v954
        %v1022 = vpop.f32.mrf.mxu0
        %v1023 = vadd.f32 0.0, %v1022
        %v1024 = vpop.f32.mrf.mxu0
        %1025 = vdwg.mxu0
        %v1026 = vadd.f32 %v785, %v1023
        %1027 = vrot.lane.b32.xlu0 %v306, 104
        %v1028 = vpop.permute.xlu0 %1027
        %1029 = vrot.lane.b32.xlu0 %v303, 72
        %v1030 = vpop.permute.xlu0 %1029
        %v1031 = vsel %vm314, %v1028, 0
        %v1033 = vsel %vm314, %v1030, 0
        %1035 = vmatprep.subr.mxu0 0.0
        %1036 = vmatpush1.xpose.msra.mxu0 0.0
        %1037 = vmatprep.subr.mxu0 0.0
        %1038 = vmatpush1.xpose.msra.mxu0 0.0
        %1039 = vmatprep.subr.mxu0 0.0
        %1040 = vmatpush1.xpose.msra.mxu0 0.0
        %1041 = vmatprep.subr.mxu0 0.0
        %1042 = vmatpush1.xpose.msra.mxu0 0.0
        %1043 = vmatprep.subr.mxu0 0.0
        %1044 = vmatpush1.xpose.msra.mxu0 0.0
        %1045 = vmatprep.subr.mxu0 0.0
        %1046 = vmatpush1.xpose.msra.mxu0 0.0
        %1047 = vmatprep.subr.mxu0 0.0
        %1048 = vmatpush1.xpose.msra.mxu0 0.0
        %1049 = vmatprep.subr.mxu0 0.0
        %1050 = vmatpush1.xpose.msra.mxu0 0.0
        %1051 = vmatprep.subr.mxu0 0.0
        %1052 = vmatpush1.xpose.msra.mxu0 0.0
        %1053 = vmatprep.subr.mxu0 0.0
        %1054 = vmatpush1.xpose.msra.mxu0 0.0
        %1055 = vmatprep.subr.mxu0 0.0
        %1056 = vmatpush1.xpose.msra.mxu0 0.0
        %1057 = vmatprep.subr.mxu0 0.0
        %1058 = vmatpush1.xpose.msra.mxu0 0.0
        %1059 = vmatprep.subr.mxu0 0.0
        %1060 = vmatpush1.xpose.msra.mxu0 0.0
        %1061 = vmatprep.subr.mxu0 0.0
        %1062 = vmatpush1.xpose.msra.mxu0 0.0
        %1063 = vmatprep.subr.mxu0 0.0
        %1064 = vmatpush1.xpose.msra.mxu0 0.0
        %1065 = vmatprep.subr.mxu0 0.0
        %1066 = vmatpush1.xpose.msra.mxu0 %v1033
        %1067 = vmatprep.subr.mxu0 0.0
        %1068 = vmatpush2.xpose.msra.mxu0 0.0
        %1069 = vmatprep.subr.mxu0 0.0
        %1070 = vmatpush2.xpose.msra.mxu0 0.0
        %1071 = vmatprep.subr.mxu0 0.0
        %1072 = vmatpush2.xpose.msra.mxu0 0.0
        %1073 = vmatprep.subr.mxu0 0.0
        %1074 = vmatpush2.xpose.msra.mxu0 0.0
        %1075 = vmatprep.subr.mxu0 0.0
        %1076 = vmatpush2.xpose.msra.mxu0 0.0
        %1077 = vmatprep.subr.mxu0 0.0
        %1078 = vmatpush2.xpose.msra.mxu0 0.0
        %1079 = vmatprep.subr.mxu0 0.0
        %1080 = vmatpush2.xpose.msra.mxu0 0.0
        %1081 = vmatprep.subr.mxu0 0.0
        %1082 = vmatpush2.xpose.msra.mxu0 0.0
        %1083 = vmatprep.subr.mxu0 0.0
        %1084 = vmatpush2.xpose.msra.mxu0 0.0
        %1085 = vmatprep.subr.mxu0 0.0
        %1086 = vmatpush2.xpose.msra.mxu0 0.0
        %1087 = vmatprep.subr.mxu0 0.0
        %1088 = vmatpush2.xpose.msra.mxu0 0.0
        %1089 = vmatprep.subr.mxu0 0.0
        %1090 = vmatpush2.xpose.msra.mxu0 0.0
        %1091 = vmatprep.subr.mxu0 0.0
        %1092 = vmatpush2.xpose.msra.mxu0 0.0
        %1093 = vmatprep.subr.mxu0 0.0
        %1094 = vmatpush2.xpose.msra.mxu0 0.0
        %1095 = vmatprep.subr.mxu0 0.0
        %1096 = vmatpush2.xpose.msra.mxu0 0.0
        %1097 = vmatprep.subr.mxu0 0.0
        %1098 = vmatpush2.xpose.msra.mxu0 0.0
        %1099 = vmatprep.mubr.f32.mxu0 0.0
        %1100 = vmatmul.mubr.f32.gmra.mxu0 %v1031
        %v1101 = vpop.f32.mrf.mxu0
        %v1102 = vadd.f32 0.0, %v1101
        %v1103 = vpop.f32.mrf.mxu0
        %1104 = vdwg.mxu0
        %v1105 = vsel %vm314, %v1102, -inf
        %1106 = vmax.xlane.f32.xlu0 %v1105
        %v1107 = vpop.xlane.xlu0 %1106
        %v1108 = vsub.f32 %v1102, %v1107
        %v1109 = vmul.f32 %v1108, 1.442695
        %v1110 = vpow.pop %v1109
        %v1111 = vsel %vm314, %v1110, 0.0
        %1112 = vadd.xlane.f32.xlu0 %v1111
        %v1113 = vpop.xlane.xlu0 %1112
        %v1114 = vrcp.pop %v1113
        %v1115 = vmul.f32 %v1110, %v1114
        %1116 = vrot.lane.b32.xlu0 %v303, 40
        %v1117 = vpop.permute.xlu0 %1116
        %v1120 = vsel %vm314, %v1115, 0
        %1122 = vmatprep.subr.mxu0 0.0
        %1123 = vmatpush1.msra.mxu0 0.0
        %1124 = vmatprep.subr.mxu0 0.0
        %1125 = vmatpush1.msra.mxu0 0.0
        %1126 = vmatprep.subr.mxu0 0.0
        %1127 = vmatpush1.msra.mxu0 0.0
        %1128 = vmatprep.subr.mxu0 0.0
        %1129 = vmatpush1.msra.mxu0 0.0
        %1130 = vmatprep.subr.mxu0 0.0
        %1131 = vmatpush1.msra.mxu0 0.0
        %1132 = vmatprep.subr.mxu0 0.0
        %1133 = vmatpush1.msra.mxu0 0.0
        %1134 = vmatprep.subr.mxu0 0.0
        %1135 = vmatpush1.msra.mxu0 0.0
        %1136 = vmatprep.subr.mxu0 0.0
        %1137 = vmatpush1.msra.mxu0 0.0
        %1138 = vmatprep.subr.mxu0 0.0
        %1139 = vmatpush1.msra.mxu0 0.0
        %1140 = vmatprep.subr.mxu0 0.0
        %1141 = vmatpush1.msra.mxu0 0.0
        %1142 = vmatprep.subr.mxu0 0.0
        %1143 = vmatpush1.msra.mxu0 0.0
        %1144 = vmatprep.subr.mxu0 0.0
        %1145 = vmatpush1.msra.mxu0 0.0
        %1146 = vmatprep.subr.mxu0 0.0
        %1147 = vmatpush1.msra.mxu0 0.0
        %1148 = vmatprep.subr.mxu0 0.0
        %1149 = vmatpush1.msra.mxu0 0.0
        %1150 = vmatprep.subr.mxu0 0.0
        %1151 = vmatpush1.msra.mxu0 0.0
        %1152 = vmatprep.subr.mxu0 0.0
        %1153 = vmatpush1.msra.mxu0 %v1117
        %1154 = vmatprep.subr.mxu0 0.0
        %1155 = vmatpush2.msra.mxu0 0.0
        %1156 = vmatprep.subr.mxu0 0.0
        %1157 = vmatpush2.msra.mxu0 0.0
        %1158 = vmatprep.subr.mxu0 0.0
        %1159 = vmatpush2.msra.mxu0 0.0
        %1160 = vmatprep.subr.mxu0 0.0
        %1161 = vmatpush2.msra.mxu0 0.0
        %1162 = vmatprep.subr.mxu0 0.0
        %1163 = vmatpush2.msra.mxu0 0.0
        %1164 = vmatprep.subr.mxu0 0.0
        %1165 = vmatpush2.msra.mxu0 0.0
        %1166 = vmatprep.subr.mxu0 0.0
        %1167 = vmatpush2.msra.mxu0 0.0
        %1168 = vmatprep.subr.mxu0 0.0
        %1169 = vmatpush2.msra.mxu0 0.0
        %1170 = vmatprep.subr.mxu0 0.0
        %1171 = vmatpush2.msra.mxu0 0.0
        %1172 = vmatprep.subr.mxu0 0.0
        %1173 = vmatpush2.msra.mxu0 0.0
        %1174 = vmatprep.subr.mxu0 0.0
        %1175 = vmatpush2.msra.mxu0 0.0
        %1176 = vmatprep.subr.mxu0 0.0
        %1177 = vmatpush2.msra.mxu0 0.0
        %1178 = vmatprep.subr.mxu0 0.0
        %1179 = vmatpush2.msra.mxu0 0.0
        %1180 = vmatprep.subr.mxu0 0.0
        %1181 = vmatpush2.msra.mxu0 0.0
        %1182 = vmatprep.subr.mxu0 0.0
        %1183 = vmatpush2.msra.mxu0 0.0
        %1184 = vmatprep.subr.mxu0 0.0
        %1185 = vmatpush2.msra.mxu0 0.0
        %1186 = vmatprep.mubr.f32.mxu0 0.0
        %1187 = vmatmul.mubr.f32.gmra.mxu0 %v1120
        %v1188 = vpop.f32.mrf.mxu0
        %v1189 = vadd.f32 0.0, %v1188
        %v1190 = vpop.f32.mrf.mxu0
        %1191 = vdwg.mxu0
        %v1193 = vsel %vm314, %v1189, 0
        %1195 = vmatprep.subr.mxu0 0.0
        %1196 = vmatpush1.msra.mxu0 0.0
        %1197 = vmatprep.subr.mxu0 0.0
        %1198 = vmatpush1.msra.mxu0 0.0
        %1199 = vmatprep.subr.mxu0 0.0
        %1200 = vmatpush1.msra.mxu0 0.0
        %1201 = vmatprep.subr.mxu0 0.0
        %1202 = vmatpush1.msra.mxu0 0.0
        %1203 = vmatprep.subr.mxu0 0.0
        %1204 = vmatpush1.msra.mxu0 0.0
        %1205 = vmatprep.subr.mxu0 0.0
        %1206 = vmatpush1.msra.mxu0 0.0
        %1207 = vmatprep.subr.mxu0 0.0
        %1208 = vmatpush1.msra.mxu0 0.0
        %1209 = vmatprep.subr.mxu0 0.0
        %1210 = vmatpush1.msra.mxu0 0.0
        %1211 = vmatprep.subr.mxu0 0.0
        %1212 = vmatpush1.msra.mxu0 0.0
        %1213 = vmatprep.subr.mxu0 0.0
        %1214 = vmatpush1.msra.mxu0 0.0
        %1215 = vmatprep.subr.mxu0 0.0
        %1216 = vmatpush1.msra.mxu0 0.0
        %1217 = vmatprep.subr.mxu0 0.0
        %1218 = vmatpush1.msra.mxu0 0.0
        %1219 = vmatprep.subr.mxu0 0.0
        %1220 = vmatpush1.msra.mxu0 0.0
        %1221 = vmatprep.subr.mxu0 0.0
        %1222 = vmatpush1.msra.mxu0 0.0
        %1223 = vmatprep.subr.mxu0 0.0
        %1224 = vmatpush1.msra.mxu0 0.0
        %1225 = vmatprep.subr.mxu0 0.0
        %1226 = vmatpush1.msra.mxu0 %v310
        %1227 = vmatprep.subr.mxu0 0.0
        %1228 = vmatpush2.msra.mxu0 0.0
        %1229 = vmatprep.subr.mxu0 0.0
        %1230 = vmatpush2.msra.mxu0 0.0
        %1231 = vmatprep.subr.mxu0 0.0
        %1232 = vmatpush2.msra.mxu0 0.0
        %1233 = vmatprep.subr.mxu0 0.0
        %1234 = vmatpush2.msra.mxu0 0.0
        %1235 = vmatprep.subr.mxu0 0.0
        %1236 = vmatpush2.msra.mxu0 0.0
        %1237 = vmatprep.subr.mxu0 0.0
        %1238 = vmatpush2.msra.mxu0 0.0
        %1239 = vmatprep.subr.mxu0 0.0
        %1240 = vmatpush2.msra.mxu0 0.0
        %1241 = vmatprep.subr.mxu0 0.0
        %1242 = vmatpush2.msra.mxu0 0.0
        %1243 = vmatprep.subr.mxu0 0.0
        %1244 = vmatpush2.msra.mxu0 0.0
        %1245 = vmatprep.subr.mxu0 0.0
        %1246 = vmatpush2.msra.mxu0 0.0
        %1247 = vmatprep.subr.mxu0 0.0
        %1248 = vmatpush2.msra.mxu0 0.0
        %1249 = vmatprep.subr.mxu0 0.0
        %1250 = vmatpush2.msra.mxu0 0.0
        %1251 = vmatprep.subr.mxu0 0.0
        %1252 = vmatpush2.msra.mxu0 0.0
        %1253 = vmatprep.subr.mxu0 0.0
        %1254 = vmatpush2.msra.mxu0 0.0
        %1255 = vmatprep.subr.mxu0 0.0
        %1256 = vmatpush2.msra.mxu0 0.0
        %1257 = vmatprep.subr.mxu0 0.0
        %1258 = vmatpush2.msra.mxu0 0.0
        %1259 = vmatprep.mubr.f32.mxu0 0.0
        %1260 = vmatmul.mubr.f32.gmra.mxu0 %v1193
        %v1261 = vpop.f32.mrf.mxu0
        %v1262 = vadd.f32 0.0, %v1261
        %v1263 = vpop.f32.mrf.mxu0
        %1264 = vdwg.mxu0
        %v1265 = vadd.f32 %v1026, %v1262
        %v1266 = vld [vmem:[%s4] sm:$0x1]
        %v1268 = vlaneseq
        %v1269 = vshrl.u32 %v1268, 7
        %v1270 = vsub.s32 0, %v1269
        %v1271 = vrot.slane %v1266, %v1270
        %v1273 = vadd.f32 %v1265, %v1271
        %1274 = vst.msk [vmem:[%s215] sm:$0xff] %vm232, %v1273
        %s1275 = sand.u32 %s137, 1
        %s1276 = scalar_lea.sflag [#allocation3], %s1275
        %s1277 = sand.u32 %s137, 1
        %s1278 = smul.addr %s1277, 8
        %s1279 = scalar_lea.vmem [#allocation2], %s1278
        // Predicated region
        $region41: #{self_attention.1} parent=39 // pred_check
          %p1280 = pneg %p147
        $region42: #{self_attention.1} parent=39 // pred_check_branch
          %1282 = sbr.rel (%p1280) target = $region44
        $region43: #{self_attention.1} parent=39 // pred_region
          %s1284 = ssub.s32 128, 128
          %1285 = vsyncadd %s1276, %s1284
          %s1286 = smul.addr %s19, 128
          %s1287 = scalar_lea.hbm %s5, %s1286
          %s1289 = sshll.u32 %s1279, 4
          %s1290 = int_to_ptr.vmem [resolvable:$true] %s1289
          %1292 = dma.vmem_to_hbm [thread:$0]  %s1290, 128, %s1287, %s1276
        $region44: #{self_attention.1} parent=39 // pred_fallthru
          _
      $region40: #{self_attention.1} parent=5 // pred_fallthru
        _
      %p1293 = scmp.le.s32.totalorder 2, %s14
      // Predicated region
      $region45: #{self_attention.1} parent=5 // pred_check
        %p1294 = pneg %p1293
      $region46: #{self_attention.1} parent=5 // pred_check_branch
        %1296 = sbr.rel (%p1294) target = $region48
      $region47: #{self_attention.1} parent=5 // pred_region
        %s1297 = ssub.s32 %s14, 2
        // Predicated region
        $region49: #{self_attention.1} parent=47 // pred_check
          %p1298 = pneg %p153
        $region50: #{self_attention.1} parent=47 // pred_check_branch
          %1300 = sbr.rel (%p1298) target = $region52
        $region51: #{self_attention.1} parent=47 // pred_region
          %s1301 = sand.u32 %s138, 1
          %s1302 = scalar_lea.sflag [#allocation3], %s1301
          %s1303 = sand.u32 %s138, 1
          %s1304 = smul.addr %s1303, 8
          %s1305 = scalar_lea.vmem [#allocation2], %s1304
          %1306 = dma.done %s1302, 128
        $region52: #{self_attention.1} parent=47 // pred_fallthru
          _
      $region48: #{self_attention.1} parent=5 // pred_fallthru
        _
    $region6: #{self_attention.1} parent=1 // loop_footer
      %s18 = sadd.s32 1, %s14
    $region7: #{self_attention.1} parent=1 // loop_footer_branch
      %13 = sbr.rel target = $region3
    $region8: #{self_attention.1} parent=1 // loop_exit
      _
    %1307 = vsyncpa [#allocation3], 1
    %s1308 = scalar_lea.sflag [#allocation3], 1
    %1309 = vsyncpa %s1308, 1

</llo_original>
